<compile_context>
chip_gen: v5e
topology: v5e:2x2
jax: 0.10.0
libtpu: 0.0.40
codegen_flags: <defaults>
</compile_context>

<pallas_src>
import functools

import jax
import jax.numpy as jnp
from jax import lax
from jax.experimental import pallas as pl
from jax.experimental.pallas import tpu as pltpu

_K = 3                               # conv kernel size (fixed by the module)
_VMEM_LIMIT = 48 * 1024 * 1024       # <= ~48 MiB budget (v7x has 64 MiB VMEM)


# ---------------------------------------------------------------------------
# Fused Pallas kernel: conv1(3x3,stride)+ReLU -> conv2(3x3,1) + 1x1 shortcut
# ---------------------------------------------------------------------------
def _fused_residual_kernel(p_ref, w1_ref, ws_ref, w2_ref, b1_ref, b2s_ref,
                           o_ref, y1p_ref, *, stride, Ho, Wo, cin, cout):
    """One batch image per grid step; everything after the input load is VMEM.

    p_ref  : (stride*stride, Hq, Wq, cin) bf16  stride-phase split of padded x
    w1_ref : (9, cin, cout)   bf16  conv1 weights, tap-major (kh*3 + kw)
    ws_ref : (cin, cout)      bf16  1x1 shortcut weights
    w2_ref : (9, cout, cout)  bf16  conv2 weights
    b1_ref : (1, cout)        f32   conv1 bias
    b2s_ref: (1, cout)        f32   conv2 bias + shortcut bias
    o_ref  : (Ho*Wo, cout)    f32   fused output for this image
    y1p_ref: (Ho+2, Wo+2, cout) bf16 scratch: zero-ring padded conv1 activation
    """
    f32 = jnp.float32
    M = Ho * Wo

    # ---- conv1: 9 shifted matmuls (in-kernel im2col) + fused 1x1 shortcut ----
    acc1 = jnp.zeros((M, cout), f32)
    sacc = jnp.zeros((M, cout), f32)
    for pi in range(stride):
        for pj in range(stride):
            ph = p_ref[pi * stride + pj]                       # (Hq, Wq, cin)
            for qi in range((_K - 1 - pi) // stride + 1):
                for qj in range((_K - 1 - pj) // stride + 1):
                    di = stride * qi + pi
                    dj = stride * qj + pj
                    win = ph[qi:qi + Ho, qj:qj + Wo, :].reshape(M, cin)
                    acc1 = acc1 + jnp.dot(win, w1_ref[di * _K + dj],
                                          preferred_element_type=f32)
                    if di == 1 and dj == 1:
                        # 1x1/stride shortcut input == conv1 centre-tap window.
                        sacc = jnp.dot(win, ws_ref[...],
                                       preferred_element_type=f32)
    y1 = jnp.maximum(acc1 + b1_ref[...], 0.0)                  # bias + ReLU (f32)

    # conv1 activation with a zero ring (conv2's pad=1), kept entirely in VMEM.
    y1p_ref[...] = jnp.zeros_like(y1p_ref)
    y1p_ref[1:Ho + 1, 1:Wo + 1, :] = (
        y1.reshape(Ho, Wo, cout).astype(y1p_ref.dtype))

    # ---- conv2: 9 shifted matmuls + bias + shortcut add ----------------------
    acc2 = sacc + b2s_ref[...]
    for di in range(_K):
        for dj in range(_K):
            win = y1p_ref[di:di + Ho, dj:dj + Wo, :].reshape(M, cout)
            acc2 = acc2 + jnp.dot(win, w2_ref[di * _K + dj],
                                  preferred_element_type=f32)
    o_ref[...] = acc2.astype(o_ref.dtype)


# ---------------------------------------------------------------------------
# One-time parameter prep (hoisted out of the jitted forward, call once)
# ---------------------------------------------------------------------------
def prepare_params(params):
    def taps(w):                      # (O, I, 3, 3) -> (9, I, O), tap-major
        return jnp.transpose(w, (2, 3, 1, 0)).reshape(9, w.shape[1], w.shape[0])

    return dict(
        w1=taps(params["c1_w"]).astype(jnp.bfloat16),
        w2=taps(params["c2_w"]).astype(jnp.bfloat16),
        ws=jnp.transpose(params["s_w"][:, :, 0, 0], (1, 0)).astype(jnp.bfloat16),
        b1=params["c1_b"].reshape(1, -1).astype(jnp.float32),
        b2s=(params["c2_b"] + params["s_b"]).reshape(1, -1).astype(jnp.float32),
    )


# ---------------------------------------------------------------------------
# Forward wrapper
# ---------------------------------------------------------------------------
def residual_block_forward(x_nchw, pp, stride=2):
    N, cin, H, W = x_nchw.shape
    cout = pp["w1"].shape[2]

    Ho = (H + 2 - _K) // stride + 1
    Wo = (W + 2 - _K) // stride + 1
    Hq = Ho + (_K - 1) // stride
    Wq = Wo + (_K - 1) // stride
    M = Ho * Wo

    # Stride-phase split of the zero-padded input (pure relayout, 1x bytes):
    #   p[n, pi*stride+pj, a, b, :] = xpad[n, stride*a + pi, stride*b + pj, :]
    # so every in-kernel conv1 window is a static, unit-stride slice.
    x_nhwc = jnp.transpose(x_nchw, (0, 2, 3, 1)).astype(jnp.bfloat16)
    xpad = jnp.pad(x_nhwc, ((0, 0),
                            (1, stride * Hq - H - 1),
                            (1, stride * Wq - W - 1),
                            (0, 0)))
    p = xpad.reshape(N, Hq, stride, Wq, stride, cin)
    p = jnp.transpose(p, (0, 2, 4, 1, 3, 5)).reshape(N, stride * stride, Hq, Wq, cin)

    kernel = functools.partial(_fused_residual_kernel, stride=stride,
                               Ho=Ho, Wo=Wo, cin=cin, cout=cout)

    flops = 2 * N * M * cout * (9 * cin + cin + 9 * cout)
    bytes_accessed = (p.size * 2 + pp["w1"].size * 2 + pp["ws"].size * 2
                      + pp["w2"].size * 2 + (pp["b1"].size + pp["b2s"].size) * 4
                      + N * M * cout * 4)

    out = pl.pallas_call(
        kernel,
        out_shape=jax.ShapeDtypeStruct((N, M, cout), jnp.float32),
        grid=(N,),
        in_specs=[
            pl.BlockSpec((None, stride * stride, Hq, Wq, cin),
                         lambda n: (n, 0, 0, 0, 0)),
            pl.BlockSpec((9, cin, cout), lambda n: (0, 0, 0)),
            pl.BlockSpec((cin, cout), lambda n: (0, 0)),
            pl.BlockSpec((9, cout, cout), lambda n: (0, 0, 0)),
            pl.BlockSpec((1, cout), lambda n: (0, 0)),
            pl.BlockSpec((1, cout), lambda n: (0, 0)),
        ],
        out_specs=pl.BlockSpec((None, M, cout), lambda n: (n, 0, 0)),
        scratch_shapes=[pltpu.VMEM((Ho + 2, Wo + 2, cout), jnp.bfloat16)],
        compiler_params=pltpu.CompilerParams(
            dimension_semantics=("parallel",),
            vmem_limit_bytes=_VMEM_LIMIT),
        cost_estimate=pl.CostEstimate(flops=flops, transcendentals=0,
                                      bytes_accessed=bytes_accessed),
    )(p, pp["w1"], pp["ws"], pp["w2"], pp["b1"], pp["b2s"])

    out = out.reshape(N, Ho, Wo, cout)
    return jnp.transpose(out, (0, 3, 1, 2))                    # back to NCHW f32


# ---------------------------------------------------------------------------
# References for the correctness check
# ---------------------------------------------------------------------------
def _reference_f32(x, params, stride=2):
    def conv(x, w, b, st, pad):
        y = lax.conv_general_dilated(
            x, w, (st, st), [(pad, pad), (pad, pad)],
            dimension_numbers=("NCHW", "OIHW", "NCHW"))
        return y + b.reshape(1, -1, 1, 1)
    y = jnp.maximum(conv(x, params["c1_w"], params["c1_b"], stride, 1), 0.0)
    y = conv(y, params["c2_w"], params["c2_b"], 1, 1)
    s = conv(x, params["s_w"], params["s_b"], stride, 0)
    return y + s


def _reference_bf16(x, params, stride=2):
    """Mirror of kernel numerics: bf16 MXU inputs, f32 accumulation, bf16 y1."""
    def conv(x, w, b, st, pad):
        y = lax.conv_general_dilated(
            x.astype(jnp.bfloat16), w.astype(jnp.bfloat16), (st, st),
            [(pad, pad), (pad, pad)],
            dimension_numbers=("NCHW", "OIHW", "NCHW"),
            preferred_element_type=jnp.float32)
        return y + b.reshape(1, -1, 1, 1).astype(jnp.float32)
    y = jnp.maximum(conv(x, params["c1_w"], params["c1_b"], stride, 1), 0.0)
    y = y.astype(jnp.bfloat16).astype(jnp.float32)
    y = conv(y, params["c2_w"], params["c2_b"], 1, 1)
    s = conv(x, params["s_w"], params["s_b"], stride, 0)
    return y + s


# ---------------------------------------------------------------------------
# Main
# ---------------------------------------------------------------------------
if __name__ == "__main__":
    in_c, out_c, stride = 4, 8, 2
    N, H, W = 2, 16, 16

    key = jax.random.PRNGKey(0)
    k_x, k1w, k1b, k2w, k2b, ksw, ksb = jax.random.split(key, 7)

    x = jax.random.normal(k_x, (N, in_c, H, W), dtype=jnp.float32)
    params = {
        "c1_w": 0.1 * jax.random.normal(k1w, (out_c, in_c, 3, 3), jnp.float32),
        "c1_b": 0.1 * jax.random.normal(k1b, (out_c,), jnp.float32),
        "c2_w": 0.1 * jax.random.normal(k2w, (out_c, out_c, 3, 3), jnp.float32),
        "c2_b": 0.1 * jax.random.normal(k2b, (out_c,), jnp.float32),
        "s_w": 0.1 * jax.random.normal(ksw, (out_c, in_c, 1, 1), jnp.float32),
        "s_b": 0.1 * jax.random.normal(ksb, (out_c,), jnp.float32),
    }

    # Weight prep is done ONCE, outside the jitted forward (per review).
    prepped = prepare_params(params)

    fwd = jax.jit(functools.partial(residual_block_forward, stride=stride))
    out = jax.block_until_ready(fwd(x, prepped))

    assert out.shape == (N, out_c, H // stride, W // stride), out.shape

    ref_mirror = _reference_bf16(x, params, stride=stride)
    ref_f32 = _reference_f32(x, params, stride=stride)
    err_mirror = float(jnp.max(jnp.abs(out - ref_mirror)))
    err_f32 = float(jnp.max(jnp.abs(out - ref_f32)))
    assert jnp.allclose(out, ref_mirror, atol=2e-3, rtol=2e-3), (
        f"mismatch vs bf16-mirrored reference (max abs err {err_mirror})")
    assert jnp.allclose(out, ref_f32, atol=5e-2, rtol=5e-2), (
        f"mismatch vs f32 reference (max abs err {err_f32})")

    print("KERNEL_OK")
</pallas_src>

<mosaic_0001>
module attributes {stable_mosaic.version = 11 : i64} {
  func.func @_fused_residual_kernel(%arg0: i32, %arg1: memref<1x4x9x9x4xbf16, #tpu.memory_space<vmem>>, %arg2: memref<9x4x8xbf16, #tpu.memory_space<vmem>>, %arg3: memref<4x8xbf16, #tpu.memory_space<vmem>>, %arg4: memref<9x8x8xbf16, #tpu.memory_space<vmem>>, %arg5: memref<1x8xf32, #tpu.memory_space<vmem>>, %arg6: memref<1x8xf32, #tpu.memory_space<vmem>>, %arg7: memref<1x64x8xf32, #tpu.memory_space<vmem>>, %arg8: memref<10x10x8xbf16, #tpu.memory_space<vmem>>) attributes {dimension_semantics = [#tpu.dimension_semantics<parallel>], iteration_bounds = array<i64: 2>, scalar_prefetch = 0 : i64, scratch_operands = 1 : i64, tpu.core_type = #tpu.core_type<tc>, window_params = [{transform_indices = @transform_0, window_bounds = array<i64: 1, 4, 9, 9, 4>}, {pipeline_mode = #tpu.pipeline_mode<synchronous>, transform_indices = @transform_1, window_bounds = array<i64: 9, 4, 8>}, {pipeline_mode = #tpu.pipeline_mode<synchronous>, transform_indices = @transform_2, window_bounds = array<i64: 4, 8>}, {pipeline_mode = #tpu.pipeline_mode<synchronous>, transform_indices = @transform_3, window_bounds = array<i64: 9, 8, 8>}, {pipeline_mode = #tpu.pipeline_mode<synchronous>, transform_indices = @transform_4, window_bounds = array<i64: 1, 8>}, {pipeline_mode = #tpu.pipeline_mode<synchronous>, transform_indices = @transform_5, window_bounds = array<i64: 1, 8>}, {transform_indices = @transform_6, window_bounds = array<i64: 1, 64, 8>}]} {
    %cst = arith.constant 0.000000e+00 : f32
    %0 = vector.broadcast %cst : f32 to vector<64x8xf32>
    %c0 = arith.constant 0 : index
    %c0_0 = arith.constant 0 : index
    %c0_1 = arith.constant 0 : index
    %c0_2 = arith.constant 0 : index
    %c0_3 = arith.constant 0 : index
    %1 = vector.load %arg1[%c0, %c0_0, %c0_1, %c0_2, %c0_3] : memref<1x4x9x9x4xbf16, #tpu.memory_space<vmem>>, vector<1x1x9x9x4xbf16>
    %2 = vector.shape_cast %1 : vector<1x1x9x9x4xbf16> to vector<9x9x4xbf16>
    %3 = vector.extract_strided_slice %2 {offsets = [0, 0, 0], sizes = [8, 8, 4], strides = [1, 1, 1]} : vector<9x9x4xbf16> to vector<8x8x4xbf16>
    %4 = vector.shape_cast %3 : vector<8x8x4xbf16> to vector<64x4xbf16>
    %c0_4 = arith.constant 0 : index
    %c0_5 = arith.constant 0 : index
    %c0_6 = arith.constant 0 : index
    %5 = vector.load %arg2[%c0_4, %c0_5, %c0_6] : memref<9x4x8xbf16, #tpu.memory_space<vmem>>, vector<1x4x8xbf16>
    %6 = vector.shape_cast %5 : vector<1x4x8xbf16> to vector<4x8xbf16>
    %cst_7 = arith.constant dense<0.000000e+00> : vector<64x8xf32>
    %7 = tpu.matmul %4, %6, %cst_7 {dimension_numbers = #tpu.dot_dimension_numbers<[1], [0], [0], [1], [0, 0, 1, 1], [], []>} : vector<64x4xbf16>, vector<4x8xbf16>, vector<64x8xf32> -> vector<64x8xf32>
    %8 = arith.addf %0, %7 : vector<64x8xf32>
    %9 = vector.extract_strided_slice %2 {offsets = [0, 1, 0], sizes = [8, 8, 4], strides = [1, 1, 1]} : vector<9x9x4xbf16> to vector<8x8x4xbf16>
    %10 = vector.shape_cast %9 : vector<8x8x4xbf16> to vector<64x4xbf16>
    %c2 = arith.constant 2 : index
    %c0_8 = arith.constant 0 : index
    %c0_9 = arith.constant 0 : index
    %11 = vector.load %arg2[%c2, %c0_8, %c0_9] : memref<9x4x8xbf16, #tpu.memory_space<vmem>>, vector<1x4x8xbf16>
    %12 = vector.shape_cast %11 : vector<1x4x8xbf16> to vector<4x8xbf16>
    %cst_10 = arith.constant dense<0.000000e+00> : vector<64x8xf32>
    %13 = tpu.matmul %10, %12, %cst_10 {dimension_numbers = #tpu.dot_dimension_numbers<[1], [0], [0], [1], [0, 0, 1, 1], [], []>} : vector<64x4xbf16>, vector<4x8xbf16>, vector<64x8xf32> -> vector<64x8xf32>
    %14 = arith.addf %8, %13 : vector<64x8xf32>
    %15 = vector.extract_strided_slice %2 {offsets = [1, 0, 0], sizes = [8, 8, 4], strides = [1, 1, 1]} : vector<9x9x4xbf16> to vector<8x8x4xbf16>
    %16 = vector.shape_cast %15 : vector<8x8x4xbf16> to vector<64x4xbf16>
    %c6 = arith.constant 6 : index
    %c0_11 = arith.constant 0 : index
    %c0_12 = arith.constant 0 : index
    %17 = vector.load %arg2[%c6, %c0_11, %c0_12] : memref<9x4x8xbf16, #tpu.memory_space<vmem>>, vector<1x4x8xbf16>
    %18 = vector.shape_cast %17 : vector<1x4x8xbf16> to vector<4x8xbf16>
    %cst_13 = arith.constant dense<0.000000e+00> : vector<64x8xf32>
    %19 = tpu.matmul %16, %18, %cst_13 {dimension_numbers = #tpu.dot_dimension_numbers<[1], [0], [0], [1], [0, 0, 1, 1], [], []>} : vector<64x4xbf16>, vector<4x8xbf16>, vector<64x8xf32> -> vector<64x8xf32>
    %20 = arith.addf %14, %19 : vector<64x8xf32>
    %21 = vector.extract_strided_slice %2 {offsets = [1, 1, 0], sizes = [8, 8, 4], strides = [1, 1, 1]} : vector<9x9x4xbf16> to vector<8x8x4xbf16>
    %22 = vector.shape_cast %21 : vector<8x8x4xbf16> to vector<64x4xbf16>
    %c8 = arith.constant 8 : index
    %c0_14 = arith.constant 0 : index
    %c0_15 = arith.constant 0 : index
    %23 = vector.load %arg2[%c8, %c0_14, %c0_15] : memref<9x4x8xbf16, #tpu.memory_space<vmem>>, vector<1x4x8xbf16>
    %24 = vector.shape_cast %23 : vector<1x4x8xbf16> to vector<4x8xbf16>
    %cst_16 = arith.constant dense<0.000000e+00> : vector<64x8xf32>
    %25 = tpu.matmul %22, %24, %cst_16 {dimension_numbers = #tpu.dot_dimension_numbers<[1], [0], [0], [1], [0, 0, 1, 1], [], []>} : vector<64x4xbf16>, vector<4x8xbf16>, vector<64x8xf32> -> vector<64x8xf32>
    %26 = arith.addf %20, %25 : vector<64x8xf32>
    %c0_17 = arith.constant 0 : index
    %c1 = arith.constant 1 : index
    %c0_18 = arith.constant 0 : index
    %c0_19 = arith.constant 0 : index
    %c0_20 = arith.constant 0 : index
    %27 = vector.load %arg1[%c0_17, %c1, %c0_18, %c0_19, %c0_20] : memref<1x4x9x9x4xbf16, #tpu.memory_space<vmem>>, vector<1x1x9x9x4xbf16>
    %28 = vector.shape_cast %27 : vector<1x1x9x9x4xbf16> to vector<9x9x4xbf16>
    %29 = vector.extract_strided_slice %28 {offsets = [0, 0, 0], sizes = [8, 8, 4], strides = [1, 1, 1]} : vector<9x9x4xbf16> to vector<8x8x4xbf16>
    %30 = vector.shape_cast %29 : vector<8x8x4xbf16> to vector<64x4xbf16>
    %c1_21 = arith.constant 1 : index
    %c0_22 = arith.constant 0 : index
    %c0_23 = arith.constant 0 : index
    %31 = vector.load %arg2[%c1_21, %c0_22, %c0_23] : memref<9x4x8xbf16, #tpu.memory_space<vmem>>, vector<1x4x8xbf16>
    %32 = vector.shape_cast %31 : vector<1x4x8xbf16> to vector<4x8xbf16>
    %cst_24 = arith.constant dense<0.000000e+00> : vector<64x8xf32>
    %33 = tpu.matmul %30, %32, %cst_24 {dimension_numbers = #tpu.dot_dimension_numbers<[1], [0], [0], [1], [0, 0, 1, 1], [], []>} : vector<64x4xbf16>, vector<4x8xbf16>, vector<64x8xf32> -> vector<64x8xf32>
    %34 = arith.addf %26, %33 : vector<64x8xf32>
    %35 = vector.extract_strided_slice %28 {offsets = [1, 0, 0], sizes = [8, 8, 4], strides = [1, 1, 1]} : vector<9x9x4xbf16> to vector<8x8x4xbf16>
    %36 = vector.shape_cast %35 : vector<8x8x4xbf16> to vector<64x4xbf16>
    %c7 = arith.constant 7 : index
    %c0_25 = arith.constant 0 : index
    %c0_26 = arith.constant 0 : index
    %37 = vector.load %arg2[%c7, %c0_25, %c0_26] : memref<9x4x8xbf16, #tpu.memory_space<vmem>>, vector<1x4x8xbf16>
    %38 = vector.shape_cast %37 : vector<1x4x8xbf16> to vector<4x8xbf16>
    %cst_27 = arith.constant dense<0.000000e+00> : vector<64x8xf32>
    %39 = tpu.matmul %36, %38, %cst_27 {dimension_numbers = #tpu.dot_dimension_numbers<[1], [0], [0], [1], [0, 0, 1, 1], [], []>} : vector<64x4xbf16>, vector<4x8xbf16>, vector<64x8xf32> -> vector<64x8xf32>
    %40 = arith.addf %34, %39 : vector<64x8xf32>
    %c0_28 = arith.constant 0 : index
    %c2_29 = arith.constant 2 : index
    %c0_30 = arith.constant 0 : index
    %c0_31 = arith.constant 0 : index
    %c0_32 = arith.constant 0 : index
    %41 = vector.load %arg1[%c0_28, %c2_29, %c0_30, %c0_31, %c0_32] : memref<1x4x9x9x4xbf16, #tpu.memory_space<vmem>>, vector<1x1x9x9x4xbf16>
    %42 = vector.shape_cast %41 : vector<1x1x9x9x4xbf16> to vector<9x9x4xbf16>
    %43 = vector.extract_strided_slice %42 {offsets = [0, 0, 0], sizes = [8, 8, 4], strides = [1, 1, 1]} : vector<9x9x4xbf16> to vector<8x8x4xbf16>
    %44 = vector.shape_cast %43 : vector<8x8x4xbf16> to vector<64x4xbf16>
    %c3 = arith.constant 3 : index
    %c0_33 = arith.constant 0 : index
    %c0_34 = arith.constant 0 : index
    %45 = vector.load %arg2[%c3, %c0_33, %c0_34] : memref<9x4x8xbf16, #tpu.memory_space<vmem>>, vector<1x4x8xbf16>
    %46 = vector.shape_cast %45 : vector<1x4x8xbf16> to vector<4x8xbf16>
    %cst_35 = arith.constant dense<0.000000e+00> : vector<64x8xf32>
    %47 = tpu.matmul %44, %46, %cst_35 {dimension_numbers = #tpu.dot_dimension_numbers<[1], [0], [0], [1], [0, 0, 1, 1], [], []>} : vector<64x4xbf16>, vector<4x8xbf16>, vector<64x8xf32> -> vector<64x8xf32>
    %48 = arith.addf %40, %47 : vector<64x8xf32>
    %49 = vector.extract_strided_slice %42 {offsets = [0, 1, 0], sizes = [8, 8, 4], strides = [1, 1, 1]} : vector<9x9x4xbf16> to vector<8x8x4xbf16>
    %50 = vector.shape_cast %49 : vector<8x8x4xbf16> to vector<64x4xbf16>
    %c5 = arith.constant 5 : index
    %c0_36 = arith.constant 0 : index
    %c0_37 = arith.constant 0 : index
    %51 = vector.load %arg2[%c5, %c0_36, %c0_37] : memref<9x4x8xbf16, #tpu.memory_space<vmem>>, vector<1x4x8xbf16>
    %52 = vector.shape_cast %51 : vector<1x4x8xbf16> to vector<4x8xbf16>
    %cst_38 = arith.constant dense<0.000000e+00> : vector<64x8xf32>
    %53 = tpu.matmul %50, %52, %cst_38 {dimension_numbers = #tpu.dot_dimension_numbers<[1], [0], [0], [1], [0, 0, 1, 1], [], []>} : vector<64x4xbf16>, vector<4x8xbf16>, vector<64x8xf32> -> vector<64x8xf32>
    %54 = arith.addf %48, %53 : vector<64x8xf32>
    %c0_39 = arith.constant 0 : index
    %c3_40 = arith.constant 3 : index
    %c0_41 = arith.constant 0 : index
    %c0_42 = arith.constant 0 : index
    %c0_43 = arith.constant 0 : index
    %55 = vector.load %arg1[%c0_39, %c3_40, %c0_41, %c0_42, %c0_43] : memref<1x4x9x9x4xbf16, #tpu.memory_space<vmem>>, vector<1x1x9x9x4xbf16>
    %56 = vector.shape_cast %55 : vector<1x1x9x9x4xbf16> to vector<9x9x4xbf16>
    %57 = vector.extract_strided_slice %56 {offsets = [0, 0, 0], sizes = [8, 8, 4], strides = [1, 1, 1]} : vector<9x9x4xbf16> to vector<8x8x4xbf16>
    %58 = vector.shape_cast %57 : vector<8x8x4xbf16> to vector<64x4xbf16>
    %c4 = arith.constant 4 : index
    %c0_44 = arith.constant 0 : index
    %c0_45 = arith.constant 0 : index
    %59 = vector.load %arg2[%c4, %c0_44, %c0_45] : memref<9x4x8xbf16, #tpu.memory_space<vmem>>, vector<1x4x8xbf16>
    %60 = vector.shape_cast %59 : vector<1x4x8xbf16> to vector<4x8xbf16>
    %cst_46 = arith.constant dense<0.000000e+00> : vector<64x8xf32>
    %61 = tpu.matmul %58, %60, %cst_46 {dimension_numbers = #tpu.dot_dimension_numbers<[1], [0], [0], [1], [0, 0, 1, 1], [], []>} : vector<64x4xbf16>, vector<4x8xbf16>, vector<64x8xf32> -> vector<64x8xf32>
    %62 = arith.addf %54, %61 : vector<64x8xf32>
    %c0_47 = arith.constant 0 : index
    %c0_48 = arith.constant 0 : index
    %63 = vector.load %arg3[%c0_47, %c0_48] : memref<4x8xbf16, #tpu.memory_space<vmem>>, vector<4x8xbf16>
    %cst_49 = arith.constant dense<0.000000e+00> : vector<64x8xf32>
    %64 = tpu.matmul %58, %63, %cst_49 {dimension_numbers = #tpu.dot_dimension_numbers<[1], [0], [0], [1], [0, 0, 1, 1], [], []>} : vector<64x4xbf16>, vector<4x8xbf16>, vector<64x8xf32> -> vector<64x8xf32>
    %c0_50 = arith.constant 0 : index
    %c0_51 = arith.constant 0 : index
    %65 = vector.load %arg5[%c0_50, %c0_51] : memref<1x8xf32, #tpu.memory_space<vmem>>, vector<1x8xf32>
    %66 = vector.broadcast %65 : vector<1x8xf32> to vector<64x8xf32>
    %67 = arith.addf %62, %66 : vector<64x8xf32>
    %cst_52 = arith.constant 0.000000e+00 : f32
    %68 = vector.broadcast %cst_52 : f32 to vector<64x8xf32>
    %69 = arith.maximumf %67, %68 : vector<64x8xf32>
    %cst_53 = arith.constant 0.000000e+00 : bf16
    %70 = vector.broadcast %cst_53 : bf16 to vector<10x10x8xbf16>
    %c0_54 = arith.constant 0 : index
    %c0_55 = arith.constant 0 : index
    %c0_56 = arith.constant 0 : index
    %71 = vector.load %arg8[%c0_54, %c0_55, %c0_56] : memref<10x10x8xbf16, #tpu.memory_space<vmem>>, vector<10x10x8xbf16>
    tpu.vector_store %arg8[%c0_54, %c0_55, %c0_56], %70 {strides = array<i32>} : memref<10x10x8xbf16, #tpu.memory_space<vmem>>, vector<10x10x8xbf16>,
    %72 = vector.shape_cast %69 : vector<64x8xf32> to vector<8x8x8xf32>
    %73 = arith.truncf %72 : vector<8x8x8xf32> to vector<8x8x8xbf16>
    %c1_57 = arith.constant 1 : index
    %c1_58 = arith.constant 1 : index
    %c0_59 = arith.constant 0 : index
    %74 = vector.load %arg8[%c1_57, %c1_58, %c0_59] : memref<10x10x8xbf16, #tpu.memory_space<vmem>>, vector<8x8x8xbf16>
    tpu.vector_store %arg8[%c1_57, %c1_58, %c0_59], %73 {strides = array<i32>} : memref<10x10x8xbf16, #tpu.memory_space<vmem>>, vector<8x8x8xbf16>,
    %c0_60 = arith.constant 0 : index
    %c0_61 = arith.constant 0 : index
    %75 = vector.load %arg6[%c0_60, %c0_61] : memref<1x8xf32, #tpu.memory_space<vmem>>, vector<1x8xf32>
    %76 = vector.broadcast %75 : vector<1x8xf32> to vector<64x8xf32>
    %77 = arith.addf %64, %76 : vector<64x8xf32>
    %c0_62 = arith.constant 0 : index
    %c0_63 = arith.constant 0 : index
    %c0_64 = arith.constant 0 : index
    %78 = vector.load %arg8[%c0_62, %c0_63, %c0_64] : memref<10x10x8xbf16, #tpu.memory_space<vmem>>, vector<8x8x8xbf16>
    %79 = vector.shape_cast %78 : vector<8x8x8xbf16> to vector<64x8xbf16>
    %c0_65 = arith.constant 0 : index
    %c0_66 = arith.constant 0 : index
    %c0_67 = arith.constant 0 : index
    %80 = vector.load %arg4[%c0_65, %c0_66, %c0_67] : memref<9x8x8xbf16, #tpu.memory_space<vmem>>, vector<1x8x8xbf16>
    %81 = vector.shape_cast %80 : vector<1x8x8xbf16> to vector<8x8xbf16>
    %cst_68 = arith.constant dense<0.000000e+00> : vector<64x8xf32>
    %82 = tpu.matmul %79, %81, %cst_68 {dimension_numbers = #tpu.dot_dimension_numbers<[1], [0], [0], [1], [0, 0, 1, 1], [], []>} : vector<64x8xbf16>, vector<8x8xbf16>, vector<64x8xf32> -> vector<64x8xf32>
    %83 = arith.addf %77, %82 : vector<64x8xf32>
    %c0_69 = arith.constant 0 : index
    %c1_70 = arith.constant 1 : index
    %c0_71 = arith.constant 0 : index
    %84 = vector.load %arg8[%c0_69, %c1_70, %c0_71] : memref<10x10x8xbf16, #tpu.memory_space<vmem>>, vector<8x8x8xbf16>
    %85 = vector.shape_cast %84 : vector<8x8x8xbf16> to vector<64x8xbf16>
    %c1_72 = arith.constant 1 : index
    %c0_73 = arith.constant 0 : index
    %c0_74 = arith.constant 0 : index
    %86 = vector.load %arg4[%c1_72, %c0_73, %c0_74] : memref<9x8x8xbf16, #tpu.memory_space<vmem>>, vector<1x8x8xbf16>
    %87 = vector.shape_cast %86 : vector<1x8x8xbf16> to vector<8x8xbf16>
    %cst_75 = arith.constant dense<0.000000e+00> : vector<64x8xf32>
    %88 = tpu.matmul %85, %87, %cst_75 {dimension_numbers = #tpu.dot_dimension_numbers<[1], [0], [0], [1], [0, 0, 1, 1], [], []>} : vector<64x8xbf16>, vector<8x8xbf16>, vector<64x8xf32> -> vector<64x8xf32>
    %89 = arith.addf %83, %88 : vector<64x8xf32>
    %c0_76 = arith.constant 0 : index
    %c2_77 = arith.constant 2 : index
    %c0_78 = arith.constant 0 : index
    %90 = vector.load %arg8[%c0_76, %c2_77, %c0_78] : memref<10x10x8xbf16, #tpu.memory_space<vmem>>, vector<8x8x8xbf16>
    %91 = vector.shape_cast %90 : vector<8x8x8xbf16> to vector<64x8xbf16>
    %c2_79 = arith.constant 2 : index
    %c0_80 = arith.constant 0 : index
    %c0_81 = arith.constant 0 : index
    %92 = vector.load %arg4[%c2_79, %c0_80, %c0_81] : memref<9x8x8xbf16, #tpu.memory_space<vmem>>, vector<1x8x8xbf16>
    %93 = vector.shape_cast %92 : vector<1x8x8xbf16> to vector<8x8xbf16>
    %cst_82 = arith.constant dense<0.000000e+00> : vector<64x8xf32>
    %94 = tpu.matmul %91, %93, %cst_82 {dimension_numbers = #tpu.dot_dimension_numbers<[1], [0], [0], [1], [0, 0, 1, 1], [], []>} : vector<64x8xbf16>, vector<8x8xbf16>, vector<64x8xf32> -> vector<64x8xf32>
    %95 = arith.addf %89, %94 : vector<64x8xf32>
    %c1_83 = arith.constant 1 : index
    %c0_84 = arith.constant 0 : index
    %c0_85 = arith.constant 0 : index
    %96 = vector.load %arg8[%c1_83, %c0_84, %c0_85] : memref<10x10x8xbf16, #tpu.memory_space<vmem>>, vector<8x8x8xbf16>
    %97 = vector.shape_cast %96 : vector<8x8x8xbf16> to vector<64x8xbf16>
    %c3_86 = arith.constant 3 : index
    %c0_87 = arith.constant 0 : index
    %c0_88 = arith.constant 0 : index
    %98 = vector.load %arg4[%c3_86, %c0_87, %c0_88] : memref<9x8x8xbf16, #tpu.memory_space<vmem>>, vector<1x8x8xbf16>
    %99 = vector.shape_cast %98 : vector<1x8x8xbf16> to vector<8x8xbf16>
    %cst_89 = arith.constant dense<0.000000e+00> : vector<64x8xf32>
    %100 = tpu.matmul %97, %99, %cst_89 {dimension_numbers = #tpu.dot_dimension_numbers<[1], [0], [0], [1], [0, 0, 1, 1], [], []>} : vector<64x8xbf16>, vector<8x8xbf16>, vector<64x8xf32> -> vector<64x8xf32>
    %101 = arith.addf %95, %100 : vector<64x8xf32>
    %c1_90 = arith.constant 1 : index
    %c1_91 = arith.constant 1 : index
    %c0_92 = arith.constant 0 : index
    %102 = vector.load %arg8[%c1_90, %c1_91, %c0_92] : memref<10x10x8xbf16, #tpu.memory_space<vmem>>, vector<8x8x8xbf16>
    %103 = vector.shape_cast %102 : vector<8x8x8xbf16> to vector<64x8xbf16>
    %c4_93 = arith.constant 4 : index
    %c0_94 = arith.constant 0 : index
    %c0_95 = arith.constant 0 : index
    %104 = vector.load %arg4[%c4_93, %c0_94, %c0_95] : memref<9x8x8xbf16, #tpu.memory_space<vmem>>, vector<1x8x8xbf16>
    %105 = vector.shape_cast %104 : vector<1x8x8xbf16> to vector<8x8xbf16>
    %cst_96 = arith.constant dense<0.000000e+00> : vector<64x8xf32>
    %106 = tpu.matmul %103, %105, %cst_96 {dimension_numbers = #tpu.dot_dimension_numbers<[1], [0], [0], [1], [0, 0, 1, 1], [], []>} : vector<64x8xbf16>, vector<8x8xbf16>, vector<64x8xf32> -> vector<64x8xf32>
    %107 = arith.addf %101, %106 : vector<64x8xf32>
    %c1_97 = arith.constant 1 : index
    %c2_98 = arith.constant 2 : index
    %c0_99 = arith.constant 0 : index
    %108 = vector.load %arg8[%c1_97, %c2_98, %c0_99] : memref<10x10x8xbf16, #tpu.memory_space<vmem>>, vector<8x8x8xbf16>
    %109 = vector.shape_cast %108 : vector<8x8x8xbf16> to vector<64x8xbf16>
    %c5_100 = arith.constant 5 : index
    %c0_101 = arith.constant 0 : index
    %c0_102 = arith.constant 0 : index
    %110 = vector.load %arg4[%c5_100, %c0_101, %c0_102] : memref<9x8x8xbf16, #tpu.memory_space<vmem>>, vector<1x8x8xbf16>
    %111 = vector.shape_cast %110 : vector<1x8x8xbf16> to vector<8x8xbf16>
    %cst_103 = arith.constant dense<0.000000e+00> : vector<64x8xf32>
    %112 = tpu.matmul %109, %111, %cst_103 {dimension_numbers = #tpu.dot_dimension_numbers<[1], [0], [0], [1], [0, 0, 1, 1], [], []>} : vector<64x8xbf16>, vector<8x8xbf16>, vector<64x8xf32> -> vector<64x8xf32>
    %113 = arith.addf %107, %112 : vector<64x8xf32>
    %c2_104 = arith.constant 2 : index
    %c0_105 = arith.constant 0 : index
    %c0_106 = arith.constant 0 : index
    %114 = vector.load %arg8[%c2_104, %c0_105, %c0_106] : memref<10x10x8xbf16, #tpu.memory_space<vmem>>, vector<8x8x8xbf16>
    %115 = vector.shape_cast %114 : vector<8x8x8xbf16> to vector<64x8xbf16>
    %c6_107 = arith.constant 6 : index
    %c0_108 = arith.constant 0 : index
    %c0_109 = arith.constant 0 : index
    %116 = vector.load %arg4[%c6_107, %c0_108, %c0_109] : memref<9x8x8xbf16, #tpu.memory_space<vmem>>, vector<1x8x8xbf16>
    %117 = vector.shape_cast %116 : vector<1x8x8xbf16> to vector<8x8xbf16>
    %cst_110 = arith.constant dense<0.000000e+00> : vector<64x8xf32>
    %118 = tpu.matmul %115, %117, %cst_110 {dimension_numbers = #tpu.dot_dimension_numbers<[1], [0], [0], [1], [0, 0, 1, 1], [], []>} : vector<64x8xbf16>, vector<8x8xbf16>, vector<64x8xf32> -> vector<64x8xf32>
    %119 = arith.addf %113, %118 : vector<64x8xf32>
    %c2_111 = arith.constant 2 : index
    %c1_112 = arith.constant 1 : index
    %c0_113 = arith.constant 0 : index
    %120 = vector.load %arg8[%c2_111, %c1_112, %c0_113] : memref<10x10x8xbf16, #tpu.memory_space<vmem>>, vector<8x8x8xbf16>
    %121 = vector.shape_cast %120 : vector<8x8x8xbf16> to vector<64x8xbf16>
    %c7_114 = arith.constant 7 : index
    %c0_115 = arith.constant 0 : index
    %c0_116 = arith.constant 0 : index
    %122 = vector.load %arg4[%c7_114, %c0_115, %c0_116] : memref<9x8x8xbf16, #tpu.memory_space<vmem>>, vector<1x8x8xbf16>
    %123 = vector.shape_cast %122 : vector<1x8x8xbf16> to vector<8x8xbf16>
    %cst_117 = arith.constant dense<0.000000e+00> : vector<64x8xf32>
    %124 = tpu.matmul %121, %123, %cst_117 {dimension_numbers = #tpu.dot_dimension_numbers<[1], [0], [0], [1], [0, 0, 1, 1], [], []>} : vector<64x8xbf16>, vector<8x8xbf16>, vector<64x8xf32> -> vector<64x8xf32>
    %125 = arith.addf %119, %124 : vector<64x8xf32>
    %c2_118 = arith.constant 2 : index
    %c2_119 = arith.constant 2 : index
    %c0_120 = arith.constant 0 : index
    %126 = vector.load %arg8[%c2_118, %c2_119, %c0_120] : memref<10x10x8xbf16, #tpu.memory_space<vmem>>, vector<8x8x8xbf16>
    %127 = vector.shape_cast %126 : vector<8x8x8xbf16> to vector<64x8xbf16>
    %c8_121 = arith.constant 8 : index
    %c0_122 = arith.constant 0 : index
    %c0_123 = arith.constant 0 : index
    %128 = vector.load %arg4[%c8_121, %c0_122, %c0_123] : memref<9x8x8xbf16, #tpu.memory_space<vmem>>, vector<1x8x8xbf16>
    %129 = vector.shape_cast %128 : vector<1x8x8xbf16> to vector<8x8xbf16>
    %cst_124 = arith.constant dense<0.000000e+00> : vector<64x8xf32>
    %130 = tpu.matmul %127, %129, %cst_124 {dimension_numbers = #tpu.dot_dimension_numbers<[1], [0], [0], [1], [0, 0, 1, 1], [], []>} : vector<64x8xbf16>, vector<8x8xbf16>, vector<64x8xf32> -> vector<64x8xf32>
    %131 = arith.addf %125, %130 : vector<64x8xf32>
    %c0_125 = arith.constant 0 : index
    %c0_126 = arith.constant 0 : index
    %c0_127 = arith.constant 0 : index
    %132 = vector.load %arg7[%c0_125, %c0_126, %c0_127] : memref<1x64x8xf32, #tpu.memory_space<vmem>>, vector<1x64x8xf32>
    %133 = vector.shape_cast %132 : vector<1x64x8xf32> to vector<64x8xf32>
    %134 = vector.shape_cast %131 : vector<64x8xf32> to vector<1x64x8xf32>
    tpu.vector_store %arg7[%c0_125, %c0_126, %c0_127], %134 {strides = array<i32>} : memref<1x64x8xf32, #tpu.memory_space<vmem>>, vector<1x64x8xf32>,
    return
  }
  func.func @transform_0(%arg0: i32) -> (i32, i32, i32, i32, i32) {
    %c0_i32 = arith.constant 0 : i32
    %c0_i32_0 = arith.constant 0 : i32
    %c0_i32_1 = arith.constant 0 : i32
    %c0_i32_2 = arith.constant 0 : i32
    %c0_i32_3 = arith.constant 0 : i32
    return %arg0, %c0_i32, %c0_i32_0, %c0_i32_1, %c0_i32_2 : i32, i32, i32, i32, i32
  }
  func.func @transform_1(%arg0: i32) -> (i32, i32, i32) {
    %c0_i32 = arith.constant 0 : i32
    %c0_i32_0 = arith.constant 0 : i32
    %c0_i32_1 = arith.constant 0 : i32
    %c0_i32_2 = arith.constant 0 : i32
    return %c0_i32, %c0_i32_0, %c0_i32_1 : i32, i32, i32
  }
  func.func @transform_2(%arg0: i32) -> (i32, i32) {
    %c0_i32 = arith.constant 0 : i32
    %c0_i32_0 = arith.constant 0 : i32
    %c0_i32_1 = arith.constant 0 : i32
    return %c0_i32, %c0_i32_0 : i32, i32
  }
  func.func @transform_3(%arg0: i32) -> (i32, i32, i32) {
    %c0_i32 = arith.constant 0 : i32
    %c0_i32_0 = arith.constant 0 : i32
    %c0_i32_1 = arith.constant 0 : i32
    %c0_i32_2 = arith.constant 0 : i32
    return %c0_i32, %c0_i32_0, %c0_i32_1 : i32, i32, i32
  }
  func.func @transform_4(%arg0: i32) -> (i32, i32) {
    %c0_i32 = arith.constant 0 : i32
    %c0_i32_0 = arith.constant 0 : i32
    %c0_i32_1 = arith.constant 0 : i32
    return %c0_i32, %c0_i32_0 : i32, i32
  }
  func.func @transform_5(%arg0: i32) -> (i32, i32) {
    %c0_i32 = arith.constant 0 : i32
    %c0_i32_0 = arith.constant 0 : i32
    %c0_i32_1 = arith.constant 0 : i32
    return %c0_i32, %c0_i32_0 : i32, i32
  }
  func.func @transform_6(%arg0: i32) -> (i32, i32, i32) {
    %c0_i32 = arith.constant 0 : i32
    %c0_i32_0 = arith.constant 0 : i32
    %c0_i32_1 = arith.constant 0 : i32
    return %arg0, %c0_i32, %c0_i32_0 : i32, i32, i32
  }
}

</mosaic_0001>

<llo_original>
// kernel: residual_block_forward.1
$region0: #{residual_block_forward.1}
  #allocation0 [shape = 'u32[]', space=smem, size = 0x4, offset = 0x4, fixed_abs, tag = 'smem constant byte address 0x4 - core index']
  #allocation1 [shape = 'u32[72,128]{1,0:T(1,128)}', space=vmem, size = 0x9000, scoped, tag = 'internal scratch']
  #allocation2 [shape = 'bf16[10,10,8]{2,1,0:T(8,128)(2,1)}', space=vmem, size = 0xa000, scoped, tag = 'scratch operand']
  %s0 = inlined_call_operand.vmem [shape: bf16[2,4,9,9,4], index: 0, kind: input, shape index: {}]
  %s1 = inlined_call_operand.vmem [shape: bf16[9,4,8], index: 1, kind: input, shape index: {}]
  %s2 = inlined_call_operand.vmem [shape: bf16[4,8], index: 2, kind: input, shape index: {}]
  %s3 = inlined_call_operand.vmem [shape: bf16[9,8,8], index: 3, kind: input, shape index: {}]
  %s4 = inlined_call_operand.vmem [shape: f32[1,8], index: 4, kind: input, shape index: {}]
  %s5 = inlined_call_operand.vmem [shape: f32[1,8], index: 5, kind: input, shape index: {}]
  %s6 = inlined_call_operand.vmem [shape: f32[2,64,8], index: 6, kind: output, shape index: {}]
  %s7 = sld [smem:[#allocation0]]
  $region57: #{residual_block_forward.1} parent=0
    _
  %s9 = ssub.s32 1, %s7
  %s10 = scalar_select 0, %s9, %s7
  loop: start=0, step=1, limit=4
  $region2: #{residual_block_forward.1} parent=0 // loop_pre_header
    _
  $region3: #{residual_block_forward.1} parent=0 // loop_header
    %s12 = sphi 0, %s16
    %p13 = scmp.ge.s32.totalorder %s12, 4
    %s22 = sphi 0, %s24
    %s25 = sphi 0, %s22
    %s26 = sphi 0, %s25
    %s42 = sphi 0, %s26
    %s46 = sphi 0, %s46
    %s48 = sphi 0, %s46
    %s49 = sphi 0, %s48
    %s63 = sphi 0, %s49
    %s67 = sphi 0, %s67
    %s69 = sphi 0, %s67
    %s70 = sphi 0, %s69
    %s84 = sphi 0, %s70
    %s88 = sphi 0, %s88
    %s90 = sphi 0, %s88
    %s91 = sphi 0, %s90
    %s105 = sphi 0, %s91
    %s109 = sphi 0, %s109
    %s111 = sphi 0, %s109
    %s112 = sphi 0, %s111
    %s126 = sphi 0, %s112
    %s130 = sphi 0, %s130
    %s132 = sphi 0, %s130
    %s133 = sphi 0, %s132
    %s147 = sphi 0, %s133
    %s153 = sphi 0, %s155
    %s156 = sphi 0, %s153
    %s157 = sphi 0, %s156
    %s173 = sphi 0, %s157
  $region4: #{residual_block_forward.1} parent=0 // loop_header_branch
    %15 = sbr.rel (%p13) target = $region8
  $region5: #{residual_block_forward.1} parent=0 // loop_body
    %s17 = ssub.s32 %s12, 1
    %s18 = ssub.s32 %s12, 2
    %s19 = sadd.s32 %s12, 1
    %s20 = ssub.s32 %s12, %s19
    %p21 = scmp.eq.s32.totalorder %s20, 0
    %s23 = sadd.s32 %s22, 1
    %s24 = scalar_select %p21, %s22, %s23
    %p27 = pneg %p21
    %p28 = scmp.eq.s32.totalorder %s12, 1
    %p29 = por %p27, %p28
    %p30 = scmp.ne.s32.totalorder %s22, %s25
    %p31 = scmp.eq.s32.totalorder %s12, 0
    %p32 = por %p30, %p31
    %p33 = scmp.ne.s32.totalorder %s22, %s25
    %p34 = scmp.eq.s32.totalorder %s17, 1
    %p35 = por %p33, %p34
    %p36 = scmp.ne.s32.totalorder %s25, %s26
    %p37 = scmp.eq.s32.totalorder %s17, 0
    %p38 = por %p36, %p37
    %p39 = scmp.ne.s32.totalorder %s25, %s26
    %p40 = scmp.eq.s32.totalorder %s18, 1
    %p41 = por %p39, %p40
    %p43 = scmp.ne.s32.totalorder %s26, %s42
    %p44 = scmp.eq.s32.totalorder %s18, 0
    %p45 = por %p43, %p44
    %s47 = sadd.s32 %s46, 1
    %p50 = scmp.eq.s32.totalorder %s12, 1
    %p51 = scmp.ne.s32.totalorder %s46, %s48
    %p52 = scmp.eq.s32.totalorder %s12, 0
    %p53 = por %p51, %p52
    %p54 = scmp.ne.s32.totalorder %s46, %s48
    %p55 = scmp.eq.s32.totalorder %s17, 1
    %p56 = por %p54, %p55
    %p57 = scmp.ne.s32.totalorder %s48, %s49
    %p58 = scmp.eq.s32.totalorder %s17, 0
    %p59 = por %p57, %p58
    %p60 = scmp.ne.s32.totalorder %s48, %s49
    %p61 = scmp.eq.s32.totalorder %s18, 1
    %p62 = por %p60, %p61
    %p64 = scmp.ne.s32.totalorder %s49, %s63
    %p65 = scmp.eq.s32.totalorder %s18, 0
    %p66 = por %p64, %p65
    %s68 = sadd.s32 %s67, 1
    %p71 = scmp.eq.s32.totalorder %s12, 1
    %p72 = scmp.ne.s32.totalorder %s67, %s69
    %p73 = scmp.eq.s32.totalorder %s12, 0
    %p74 = por %p72, %p73
    %p75 = scmp.ne.s32.totalorder %s67, %s69
    %p76 = scmp.eq.s32.totalorder %s17, 1
    %p77 = por %p75, %p76
    %p78 = scmp.ne.s32.totalorder %s69, %s70
    %p79 = scmp.eq.s32.totalorder %s17, 0
    %p80 = por %p78, %p79
    %p81 = scmp.ne.s32.totalorder %s69, %s70
    %p82 = scmp.eq.s32.totalorder %s18, 1
    %p83 = por %p81, %p82
    %p85 = scmp.ne.s32.totalorder %s70, %s84
    %p86 = scmp.eq.s32.totalorder %s18, 0
    %p87 = por %p85, %p86
    %s89 = sadd.s32 %s88, 1
    %p92 = scmp.eq.s32.totalorder %s12, 1
    %p93 = scmp.ne.s32.totalorder %s88, %s90
    %p94 = scmp.eq.s32.totalorder %s12, 0
    %p95 = por %p93, %p94
    %p96 = scmp.ne.s32.totalorder %s88, %s90
    %p97 = scmp.eq.s32.totalorder %s17, 1
    %p98 = por %p96, %p97
    %p99 = scmp.ne.s32.totalorder %s90, %s91
    %p100 = scmp.eq.s32.totalorder %s17, 0
    %p101 = por %p99, %p100
    %p102 = scmp.ne.s32.totalorder %s90, %s91
    %p103 = scmp.eq.s32.totalorder %s18, 1
    %p104 = por %p102, %p103
    %p106 = scmp.ne.s32.totalorder %s91, %s105
    %p107 = scmp.eq.s32.totalorder %s18, 0
    %p108 = por %p106, %p107
    %s110 = sadd.s32 %s109, 1
    %p113 = scmp.eq.s32.totalorder %s12, 1
    %p114 = scmp.ne.s32.totalorder %s109, %s111
    %p115 = scmp.eq.s32.totalorder %s12, 0
    %p116 = por %p114, %p115
    %p117 = scmp.ne.s32.totalorder %s109, %s111
    %p118 = scmp.eq.s32.totalorder %s17, 1
    %p119 = por %p117, %p118
    %p120 = scmp.ne.s32.totalorder %s111, %s112
    %p121 = scmp.eq.s32.totalorder %s17, 0
    %p122 = por %p120, %p121
    %p123 = scmp.ne.s32.totalorder %s111, %s112
    %p124 = scmp.eq.s32.totalorder %s18, 1
    %p125 = por %p123, %p124
    %p127 = scmp.ne.s32.totalorder %s112, %s126
    %p128 = scmp.eq.s32.totalorder %s18, 0
    %p129 = por %p127, %p128
    %s131 = sadd.s32 %s130, 1
    %p134 = scmp.eq.s32.totalorder %s12, 1
    %p135 = scmp.ne.s32.totalorder %s130, %s132
    %p136 = scmp.eq.s32.totalorder %s12, 0
    %p137 = por %p135, %p136
    %p138 = scmp.ne.s32.totalorder %s130, %s132
    %p139 = scmp.eq.s32.totalorder %s17, 1
    %p140 = por %p138, %p139
    %p141 = scmp.ne.s32.totalorder %s132, %s133
    %p142 = scmp.eq.s32.totalorder %s17, 0
    %p143 = por %p141, %p142
    %p144 = scmp.ne.s32.totalorder %s132, %s133
    %p145 = scmp.eq.s32.totalorder %s18, 1
    %p146 = por %p144, %p145
    %p148 = scmp.ne.s32.totalorder %s133, %s147
    %p149 = scmp.eq.s32.totalorder %s18, 0
    %p150 = por %p148, %p149
    %s151 = ssub.s32 %s12, %s19
    %p152 = scmp.eq.s32.totalorder %s151, 0
    %s154 = sadd.s32 %s153, 1
    %s155 = scalar_select %p152, %s153, %s154
    %p158 = pneg %p152
    %p159 = scmp.eq.s32.totalorder %s12, 1
    %p160 = por %p158, %p159
    %p161 = scmp.ne.s32.totalorder %s153, %s156
    %p162 = scmp.eq.s32.totalorder %s12, 0
    %p163 = por %p161, %p162
    %p164 = scmp.ne.s32.totalorder %s153, %s156
    %p165 = scmp.eq.s32.totalorder %s17, 1
    %p166 = por %p164, %p165
    %p167 = scmp.ne.s32.totalorder %s156, %s157
    %p168 = scmp.eq.s32.totalorder %s17, 0
    %p169 = por %p167, %p168
    %p170 = scmp.ne.s32.totalorder %s156, %s157
    %p171 = scmp.eq.s32.totalorder %s18, 1
    %p172 = por %p170, %p171
    %p174 = scmp.ne.s32.totalorder %s157, %s173
    %p175 = scmp.eq.s32.totalorder %s18, 0
    %p176 = por %p174, %p175
    %p177 = scmp.le.s32.totalorder 1, %s12
    %p178 = scmp.lt.s32.totalorder %s12, 3
    %p179 = pnand %p177, %p178
    %p180 = pneg %p179
    // Predicated region
    $region9: #{residual_block_forward.1} parent=5 // pred_check
      _
    $region10: #{residual_block_forward.1} parent=5 // pred_check_branch
      %182 = sbr.rel (%p179) target = $region12
    $region11: #{residual_block_forward.1} parent=5 // pred_region
      %s183 = ssub.s32 %s12, 1
      // Predicated region
      $region13: #{residual_block_forward.1} parent=11 // pred_check
        %p184 = pneg %p59
      $region14: #{residual_block_forward.1} parent=11 // pred_check_branch
        %186 = sbr.rel (%p184) target = $region16
      $region15: #{residual_block_forward.1} parent=11 // pred_region
        _
      $region16: #{residual_block_forward.1} parent=11 // pred_fallthru
        _
      // Predicated region
      $region17: #{residual_block_forward.1} parent=11 // pred_check
        %p187 = pneg %p80
      $region18: #{residual_block_forward.1} parent=11 // pred_check_branch
        %189 = sbr.rel (%p187) target = $region20
      $region19: #{residual_block_forward.1} parent=11 // pred_region
        _
      $region20: #{residual_block_forward.1} parent=11 // pred_fallthru
        _
      // Predicated region
      $region21: #{residual_block_forward.1} parent=11 // pred_check
        %p190 = pneg %p101
      $region22: #{residual_block_forward.1} parent=11 // pred_check_branch
        %192 = sbr.rel (%p190) target = $region24
      $region23: #{residual_block_forward.1} parent=11 // pred_region
        _
      $region24: #{residual_block_forward.1} parent=11 // pred_fallthru
        _
      // Predicated region
      $region25: #{residual_block_forward.1} parent=11 // pred_check
        %p193 = pneg %p122
      $region26: #{residual_block_forward.1} parent=11 // pred_check_branch
        %195 = sbr.rel (%p193) target = $region28
      $region27: #{residual_block_forward.1} parent=11 // pred_region
        _
      $region28: #{residual_block_forward.1} parent=11 // pred_fallthru
        _
      // Predicated region
      $region29: #{residual_block_forward.1} parent=11 // pred_check
        %p196 = pneg %p143
      $region30: #{residual_block_forward.1} parent=11 // pred_check_branch
        %198 = sbr.rel (%p196) target = $region32
      $region31: #{residual_block_forward.1} parent=11 // pred_region
        _
      $region32: #{residual_block_forward.1} parent=11 // pred_fallthru
        _
    $region12: #{residual_block_forward.1} parent=5 // pred_fallthru
      _
    %p199 = scmp.lt.s32.totalorder %s12, 2
    // Predicated region
    $region33: #{residual_block_forward.1} parent=5 // pred_check
      %p200 = pneg %p199
    $region34: #{residual_block_forward.1} parent=5 // pred_check_branch
      %202 = sbr.rel (%p200) target = $region36
    $region35: #{residual_block_forward.1} parent=5 // pred_region
      // Predicated region
      $region37: #{residual_block_forward.1} parent=35 // pred_check
        %p203 = pneg %p32
      $region38: #{residual_block_forward.1} parent=35 // pred_check_branch
        %205 = sbr.rel (%p203) target = $region40
      $region39: #{residual_block_forward.1} parent=35 // pred_region
        %p206 = scmp.lt.s32.totalorder %s12, 1
        %s207 = scalar_select %p206, %s12, 1
        %s208 = smul.addr %s207, 72
        %s209 = smul.addr %s208, 4
        %s210 = scalar_lea.vmem %s0, %s209
      $region40: #{residual_block_forward.1} parent=35 // pred_fallthru
        _
    $region36: #{residual_block_forward.1} parent=5 // pred_fallthru
      _
    %p211 = scmp.le.s32.totalorder 1, %s12
    %p212 = scmp.lt.s32.totalorder %s12, 3
    %p213 = pnand %p211, %p212
    %p214 = pneg %p213
    // Predicated region
    $region41: #{residual_block_forward.1} parent=5 // pred_check
      _
    $region42: #{residual_block_forward.1} parent=5 // pred_check_branch
      %216 = sbr.rel (%p213) target = $region44
    $region43: #{residual_block_forward.1} parent=5 // pred_region
      %s217 = ssub.s32 %s12, 1
      %p218 = scmp.lt.s32.totalorder %s17, 1
      %s219 = scalar_select %p218, %s17, 1
      %s220 = smul.addr %s219, 72
      %s221 = smul.addr %s220, 4
      %s222 = scalar_lea.vmem %s0, %s221
      %p223 = pneg %p38
      %p224 = pneg %p35
      %p225 = pneg %p59
      %p226 = pneg %p56
      %p227 = pneg %p80
      %p228 = pneg %p77
      %p229 = pneg %p101
      %p230 = pneg %p98
      %p231 = pneg %p122
      %p232 = pneg %p119
      %p233 = pneg %p143
      %p234 = pneg %p140
      %p235 = pneg %p169
      %p236 = pneg %p166
      %p237 = scmp.lt.s32.totalorder %s17, 1
      %s238 = scalar_select %p237, %s17, 1
      %s239 = smul.addr %s238, 8
      %s240 = smul.addr %s239, 8
      %s241 = scalar_lea.vmem %s6, %s240
      %p242 = scmp.lt.s32.totalorder %s17, 1
      %s243 = scalar_select %p242, %s17, 1
      %s244 = smul.addr %s243, 72
      %s245 = smul.addr %s244, 4
      %s246 = scalar_lea.vmem %s0, %s245
      %p247 = scmp.lt.s32.totalorder %s17, 1
      %s248 = scalar_select %p247, %s17, 1
      %s249 = smul.addr %s248, 8
      %s250 = smul.addr %s249, 8
      %s251 = scalar_lea.vmem %s6, %s250
      %v253 = vld [vmem:[%s246] sm:$0xf]
      %v254 = vld [vmem:[%s246 + $0x4] sm:$0x1]
      %v255 = vld [vmem:[%s246 + $0x8] sm:$0xf]
      %v256 = vld [vmem:[%s246 + $0xc] sm:$0x1]
      %v257 = vld [vmem:[%s246 + $0x10] sm:$0xf]
      %v258 = vld [vmem:[%s246 + $0x14] sm:$0x1]
      %v259 = vld [vmem:[%s246 + $0x18] sm:$0xf]
      %v260 = vld [vmem:[%s246 + $0x1c] sm:$0x1]
      %v261 = vld [vmem:[%s246 + $0x20] sm:$0xf]
      %v262 = vld [vmem:[%s246 + $0x24] sm:$0x1]
      %v263 = vld [vmem:[%s246 + $0x28] sm:$0xf]
      %v264 = vld [vmem:[%s246 + $0x2c] sm:$0x1]
      %v265 = vld [vmem:[%s246 + $0x30] sm:$0xf]
      %v266 = vld [vmem:[%s246 + $0x34] sm:$0x1]
      %v267 = vld [vmem:[%s246 + $0x38] sm:$0xf]
      %v268 = vld [vmem:[%s246 + $0x3c] sm:$0x1]
      %v269 = vld [vmem:[%s246 + $0x40] sm:$0xf]
      %v270 = vld [vmem:[%s246 + $0x44] sm:$0x1]
      %v271 = vld [vmem:[%s1] sm:$0x3]
      %vm272 = vsmask.f32 3328
      %vm273 = vsmask.f32 7440
      %vm274 = vmor %vm272, %vm273
      %v276 = vshrl.u32 %v253, 16
      %v278 = vrot.slane %v276, 4
      %v279 = vshll.u32 %v253, 16
      %v281 = vrot.slane %v279, 5
      %v282 = vor.u32 %v278, %v281
      %v283 = vrot.slane %v282, 4
      %v285 = vshll.u32 %v254, 16
      %v287 = vrot.slane %v285, 5
      %v288 = vsel %vm274, %v283, %v287
      %v290 = vshrl.u32 %v255, 16
      %v292 = vrot.slane %v290, 4
      %v293 = vshll.u32 %v255, 16
      %v295 = vrot.slane %v293, 5
      %v296 = vor.u32 %v292, %v295
      %v297 = vrot.slane %v296, 4
      %v299 = vshll.u32 %v256, 16
      %v301 = vrot.slane %v299, 5
      %v302 = vsel %vm274, %v297, %v301
      %v304 = vshrl.u32 %v257, 16
      %v306 = vrot.slane %v304, 4
      %v307 = vshll.u32 %v257, 16
      %v309 = vrot.slane %v307, 5
      %v310 = vor.u32 %v306, %v309
      %v311 = vrot.slane %v310, 4
      %v313 = vshll.u32 %v258, 16
      %v315 = vrot.slane %v313, 5
      %v316 = vsel %vm274, %v311, %v315
      %v318 = vshrl.u32 %v259, 16
      %v320 = vrot.slane %v318, 4
      %v321 = vshll.u32 %v259, 16
      %v323 = vrot.slane %v321, 5
      %v324 = vor.u32 %v320, %v323
      %v325 = vrot.slane %v324, 4
      %v327 = vshll.u32 %v260, 16
      %v329 = vrot.slane %v327, 5
      %v330 = vsel %vm274, %v325, %v329
      %v332 = vshrl.u32 %v261, 16
      %v334 = vrot.slane %v332, 4
      %v335 = vshll.u32 %v261, 16
      %v337 = vrot.slane %v335, 5
      %v338 = vor.u32 %v334, %v337
      %v339 = vrot.slane %v338, 4
      %v341 = vshll.u32 %v262, 16
      %v343 = vrot.slane %v341, 5
      %v344 = vsel %vm274, %v339, %v343
      %v346 = vshrl.u32 %v263, 16
      %v348 = vrot.slane %v346, 4
      %v349 = vshll.u32 %v263, 16
      %v351 = vrot.slane %v349, 5
      %v352 = vor.u32 %v348, %v351
      %v353 = vrot.slane %v352, 4
      %v355 = vshll.u32 %v264, 16
      %v357 = vrot.slane %v355, 5
      %v358 = vsel %vm274, %v353, %v357
      %v360 = vshrl.u32 %v265, 16
      %v362 = vrot.slane %v360, 4
      %v363 = vshll.u32 %v265, 16
      %v365 = vrot.slane %v363, 5
      %v366 = vor.u32 %v362, %v365
      %v367 = vrot.slane %v366, 4
      %v369 = vshll.u32 %v266, 16
      %v371 = vrot.slane %v369, 5
      %v372 = vsel %vm274, %v367, %v371
      %v374 = vshrl.u32 %v267, 16
      %v376 = vrot.slane %v374, 4
      %v377 = vshll.u32 %v267, 16
      %v379 = vrot.slane %v377, 5
      %v380 = vor.u32 %v376, %v379
      %v381 = vrot.slane %v380, 4
      %v383 = vshll.u32 %v268, 16
      %v385 = vrot.slane %v383, 5
      %v386 = vsel %vm274, %v381, %v385
      %s387 = scalar_lea.vmem %s1, 4
      %v388 = vld [vmem:[%s387] sm:$0x3]
      %v389 = vunpack.c.l.b16 %v288
      %v390 = vunpack.c.l.b16 %v302
      %v391 = vunpack.c.l.b16 %v316
      %v392 = vunpack.c.l.b16 %v330
      %v393 = vunpack.c.l.b16 %v344
      %v394 = vunpack.c.l.b16 %v358
      %v395 = vunpack.c.l.b16 %v372
      %v396 = vunpack.c.l.b16 %v386
      %v397 = vpack.c.b16 %v390, %v389
      %v398 = vpack.c.b16 %v392, %v391
      %v399 = vpack.c.b16 %v394, %v393
      %v400 = vpack.c.b16 %v396, %v395
      %vm401 = vcmask 31744
      %v403 = vsel %vm401, %v397, 0
      %v406 = vsel %vm401, %v398, 0
      %v409 = vsel %vm401, %v399, 0
      %v412 = vsel %vm401, %v400, 0
      %vm414 = vcmask 1041408
      %v416 = vsel %vm414, %v388, 0
      %418 = vmatpush.bf16.msra.mxu0 0
      %419 = vmatpush.bf16.msra.mxu0 0
      %420 = vmatpush.bf16.msra.mxu0 0
      %421 = vmatpush.bf16.msra.mxu0 0
      %422 = vmatpush.bf16.msra.mxu0 0
      %423 = vmatpush.bf16.msra.mxu0 0
      %424 = vmatpush.bf16.msra.mxu0 0
      %425 = vmatpush.bf16.msra.mxu0 %v416
      %426 = vmatmul.bf16.gmra.mxu0 %v403
      %v427 = vpop.f32.mrf.mxu0
      %v428 = vadd.f32 0.0, %v427
      %v429 = vpop.f32.mrf.mxu0
      %v430 = vadd.f32 0.0, %v429
      %431 = vmatmul.bf16.gmra.mxu0 %v406
      %v432 = vpop.f32.mrf.mxu0
      %v433 = vadd.f32 0.0, %v432
      %v434 = vpop.f32.mrf.mxu0
      %v435 = vadd.f32 0.0, %v434
      %436 = vmatmul.bf16.gmra.mxu0 %v409
      %v437 = vpop.f32.mrf.mxu0
      %v438 = vadd.f32 0.0, %v437
      %v439 = vpop.f32.mrf.mxu0
      %v440 = vadd.f32 0.0, %v439
      %441 = vmatmul.bf16.gmra.mxu0 %v412
      %v442 = vpop.f32.mrf.mxu0
      %v443 = vadd.f32 0.0, %v442
      %v444 = vpop.f32.mrf.mxu0
      %v445 = vadd.f32 0.0, %v444
      %446 = vdwg.mxu0
      %v455 = vunpack.c.l.b16 %v253
      %v456 = vunpack.c.l.b16 %v255
      %v457 = vunpack.c.l.b16 %v257
      %v458 = vunpack.c.l.b16 %v259
      %v459 = vunpack.c.l.b16 %v261
      %v460 = vunpack.c.l.b16 %v263
      %v461 = vunpack.c.l.b16 %v265
      %v462 = vunpack.c.l.b16 %v267
      %v463 = vpack.c.b16 %v456, %v455
      %v464 = vpack.c.b16 %v458, %v457
      %v465 = vpack.c.b16 %v460, %v459
      %v466 = vpack.c.b16 %v462, %v461
      %v468 = vsel %vm401, %v463, 0
      %v471 = vsel %vm401, %v464, 0
      %v474 = vsel %vm401, %v465, 0
      %v477 = vsel %vm401, %v466, 0
      %v480 = vsel %vm414, %v271, 0
      %482 = vmatpush.bf16.msra.mxu0 0
      %483 = vmatpush.bf16.msra.mxu0 0
      %484 = vmatpush.bf16.msra.mxu0 0
      %485 = vmatpush.bf16.msra.mxu0 0
      %486 = vmatpush.bf16.msra.mxu0 0
      %487 = vmatpush.bf16.msra.mxu0 0
      %488 = vmatpush.bf16.msra.mxu0 0
      %489 = vmatpush.bf16.msra.mxu0 %v480
      %490 = vmatmul.bf16.gmra.mxu0 %v468
      %v491 = vpop.f32.mrf.mxu0
      %v492 = vadd.f32 %v428, %v491
      %v493 = vpop.f32.mrf.mxu0
      %v494 = vadd.f32 %v430, %v493
      %495 = vmatmul.bf16.gmra.mxu0 %v471
      %v496 = vpop.f32.mrf.mxu0
      %v497 = vadd.f32 %v433, %v496
      %v498 = vpop.f32.mrf.mxu0
      %v499 = vadd.f32 %v435, %v498
      %500 = vmatmul.bf16.gmra.mxu0 %v474
      %v501 = vpop.f32.mrf.mxu0
      %v502 = vadd.f32 %v438, %v501
      %v503 = vpop.f32.mrf.mxu0
      %v504 = vadd.f32 %v440, %v503
      %505 = vmatmul.bf16.gmra.mxu0 %v477
      %v506 = vpop.f32.mrf.mxu0
      %v507 = vadd.f32 %v443, %v506
      %v508 = vpop.f32.mrf.mxu0
      %v509 = vadd.f32 %v445, %v508
      %510 = vdwg.mxu0
      %s511 = scalar_lea.vmem %s1, 12
      %v512 = vld [vmem:[%s511] sm:$0x3]
      %v514 = vunpack.c.l.b16 %v269
      %v515 = vpack.c.b16 %v457, %v456
      %v516 = vpack.c.b16 %v459, %v458
      %v517 = vpack.c.b16 %v461, %v460
      %v518 = vpack.c.b16 %v514, %v462
      %v520 = vsel %vm401, %v515, 0
      %v523 = vsel %vm401, %v516, 0
      %v526 = vsel %vm401, %v517, 0
      %v529 = vsel %vm401, %v518, 0
      %v532 = vsel %vm414, %v512, 0
      %534 = vmatpush.bf16.msra.mxu0 0
      %535 = vmatpush.bf16.msra.mxu0 0
      %536 = vmatpush.bf16.msra.mxu0 0
      %537 = vmatpush.bf16.msra.mxu0 0
      %538 = vmatpush.bf16.msra.mxu0 0
      %539 = vmatpush.bf16.msra.mxu0 0
      %540 = vmatpush.bf16.msra.mxu0 0
      %541 = vmatpush.bf16.msra.mxu0 %v532
      %542 = vmatmul.bf16.gmra.mxu0 %v520
      %v543 = vpop.f32.mrf.mxu0
      %v544 = vadd.f32 0.0, %v543
      %v545 = vpop.f32.mrf.mxu0
      %v546 = vadd.f32 0.0, %v545
      %547 = vmatmul.bf16.gmra.mxu0 %v523
      %v548 = vpop.f32.mrf.mxu0
      %v549 = vadd.f32 0.0, %v548
      %v550 = vpop.f32.mrf.mxu0
      %v551 = vadd.f32 0.0, %v550
      %552 = vmatmul.bf16.gmra.mxu0 %v526
      %v553 = vpop.f32.mrf.mxu0
      %v554 = vadd.f32 0.0, %v553
      %v555 = vpop.f32.mrf.mxu0
      %v556 = vadd.f32 0.0, %v555
      %557 = vmatmul.bf16.gmra.mxu0 %v529
      %v558 = vpop.f32.mrf.mxu0
      %v559 = vadd.f32 0.0, %v558
      %v560 = vpop.f32.mrf.mxu0
      %v561 = vadd.f32 0.0, %v560
      %562 = vdwg.mxu0
      %v563 = vadd.f32 %v492, %v544
      %v564 = vadd.f32 %v494, %v546
      %v565 = vadd.f32 %v497, %v549
      %v566 = vadd.f32 %v499, %v551
      %v567 = vadd.f32 %v502, %v554
      %v568 = vadd.f32 %v504, %v556
      %v569 = vadd.f32 %v507, %v559
      %v570 = vadd.f32 %v509, %v561
      %v572 = vshrl.u32 %v269, 16
      %v574 = vrot.slane %v572, 4
      %v575 = vshll.u32 %v269, 16
      %v577 = vrot.slane %v575, 5
      %v578 = vor.u32 %v574, %v577
      %v579 = vrot.slane %v578, 4
      %v581 = vshll.u32 %v270, 16
      %v583 = vrot.slane %v581, 5
      %v584 = vsel %vm274, %v579, %v583
      %s585 = scalar_lea.vmem %s1, 16
      %v586 = vld [vmem:[%s585] sm:$0x3]
      %v587 = vunpack.c.l.b16 %v584
      %v588 = vpack.c.b16 %v391, %v390
      %v589 = vpack.c.b16 %v393, %v392
      %v590 = vpack.c.b16 %v395, %v394
      %v591 = vpack.c.b16 %v587, %v396
      %v593 = vsel %vm401, %v588, 0
      %v596 = vsel %vm401, %v589, 0
      %v599 = vsel %vm401, %v590, 0
      %v602 = vsel %vm401, %v591, 0
      %v605 = vsel %vm414, %v586, 0
      %607 = vmatpush.bf16.msra.mxu0 0
      %608 = vmatpush.bf16.msra.mxu0 0
      %609 = vmatpush.bf16.msra.mxu0 0
      %610 = vmatpush.bf16.msra.mxu0 0
      %611 = vmatpush.bf16.msra.mxu0 0
      %612 = vmatpush.bf16.msra.mxu0 0
      %613 = vmatpush.bf16.msra.mxu0 0
      %614 = vmatpush.bf16.msra.mxu0 %v605
      %615 = vmatmul.bf16.gmra.mxu0 %v593
      %v616 = vpop.f32.mrf.mxu0
      %v617 = vadd.f32 0.0, %v616
      %v618 = vpop.f32.mrf.mxu0
      %v619 = vadd.f32 0.0, %v618
      %620 = vmatmul.bf16.gmra.mxu0 %v596
      %v621 = vpop.f32.mrf.mxu0
      %v622 = vadd.f32 0.0, %v621
      %v623 = vpop.f32.mrf.mxu0
      %v624 = vadd.f32 0.0, %v623
      %625 = vmatmul.bf16.gmra.mxu0 %v599
      %v626 = vpop.f32.mrf.mxu0
      %v627 = vadd.f32 0.0, %v626
      %v628 = vpop.f32.mrf.mxu0
      %v629 = vadd.f32 0.0, %v628
      %630 = vmatmul.bf16.gmra.mxu0 %v602
      %v631 = vpop.f32.mrf.mxu0
      %v632 = vadd.f32 0.0, %v631
      %v633 = vpop.f32.mrf.mxu0
      %v634 = vadd.f32 0.0, %v633
      %635 = vdwg.mxu0
      %v636 = vadd.f32 %v563, %v617
      %v637 = vadd.f32 %v564, %v619
      %v638 = vadd.f32 %v565, %v622
      %v639 = vadd.f32 %v566, %v624
      %v640 = vadd.f32 %v567, %v627
      %v641 = vadd.f32 %v568, %v629
      %v642 = vadd.f32 %v569, %v632
      %v643 = vadd.f32 %v570, %v634
      %s644 = scalar_lea.vmem %s246, 72
      %v645 = vld [vmem:[%s644] sm:$0xf]
      %v646 = vld [vmem:[%s644 + $0x8] sm:$0xf]
      %v647 = vld [vmem:[%s644 + $0x10] sm:$0xf]
      %v648 = vld [vmem:[%s644 + $0x18] sm:$0xf]
      %v649 = vld [vmem:[%s644 + $0x20] sm:$0xf]
      %v650 = vld [vmem:[%s644 + $0x28] sm:$0xf]
      %v651 = vld [vmem:[%s644 + $0x30] sm:$0xf]
      %v652 = vld [vmem:[%s644 + $0x38] sm:$0xf]
      %v653 = vld [vmem:[%s644 + $0x40] sm:$0xf]
      %s654 = scalar_lea.vmem %s1, 2
      %v655 = vld [vmem:[%s654] sm:$0x3]
      %v664 = vunpack.c.l.b16 %v645
      %v665 = vunpack.c.l.b16 %v646
      %v666 = vunpack.c.l.b16 %v647
      %v667 = vunpack.c.l.b16 %v648
      %v668 = vunpack.c.l.b16 %v649
      %v669 = vunpack.c.l.b16 %v650
      %v670 = vunpack.c.l.b16 %v651
      %v671 = vunpack.c.l.b16 %v652
      %v672 = vpack.c.b16 %v665, %v664
      %v673 = vpack.c.b16 %v667, %v666
      %v674 = vpack.c.b16 %v669, %v668
      %v675 = vpack.c.b16 %v671, %v670
      %v677 = vsel %vm401, %v672, 0
      %v680 = vsel %vm401, %v673, 0
      %v683 = vsel %vm401, %v674, 0
      %v686 = vsel %vm401, %v675, 0
      %v689 = vsel %vm414, %v655, 0
      %691 = vmatpush.bf16.msra.mxu0 0
      %692 = vmatpush.bf16.msra.mxu0 0
      %693 = vmatpush.bf16.msra.mxu0 0
      %694 = vmatpush.bf16.msra.mxu0 0
      %695 = vmatpush.bf16.msra.mxu0 0
      %696 = vmatpush.bf16.msra.mxu0 0
      %697 = vmatpush.bf16.msra.mxu0 0
      %698 = vmatpush.bf16.msra.mxu0 %v689
      %699 = vmatmul.bf16.gmra.mxu0 %v677
      %v700 = vpop.f32.mrf.mxu0
      %v701 = vadd.f32 0.0, %v700
      %v702 = vpop.f32.mrf.mxu0
      %v703 = vadd.f32 0.0, %v702
      %704 = vmatmul.bf16.gmra.mxu0 %v680
      %v705 = vpop.f32.mrf.mxu0
      %v706 = vadd.f32 0.0, %v705
      %v707 = vpop.f32.mrf.mxu0
      %v708 = vadd.f32 0.0, %v707
      %709 = vmatmul.bf16.gmra.mxu0 %v683
      %v710 = vpop.f32.mrf.mxu0
      %v711 = vadd.f32 0.0, %v710
      %v712 = vpop.f32.mrf.mxu0
      %v713 = vadd.f32 0.0, %v712
      %714 = vmatmul.bf16.gmra.mxu0 %v686
      %v715 = vpop.f32.mrf.mxu0
      %v716 = vadd.f32 0.0, %v715
      %v717 = vpop.f32.mrf.mxu0
      %v718 = vadd.f32 0.0, %v717
      %719 = vdwg.mxu0
      %v720 = vadd.f32 %v636, %v701
      %v721 = vadd.f32 %v637, %v703
      %v722 = vadd.f32 %v638, %v706
      %v723 = vadd.f32 %v639, %v708
      %v724 = vadd.f32 %v640, %v711
      %v725 = vadd.f32 %v641, %v713
      %v726 = vadd.f32 %v642, %v716
      %v727 = vadd.f32 %v643, %v718
      %s728 = scalar_lea.vmem %s1, 14
      %v729 = vld [vmem:[%s728] sm:$0x3]
      %v731 = vunpack.c.l.b16 %v653
      %v732 = vpack.c.b16 %v666, %v665
      %v733 = vpack.c.b16 %v668, %v667
      %v734 = vpack.c.b16 %v670, %v669
      %v735 = vpack.c.b16 %v731, %v671
      %v737 = vsel %vm401, %v732, 0
      %v740 = vsel %vm401, %v733, 0
      %v743 = vsel %vm401, %v734, 0
      %v746 = vsel %vm401, %v735, 0
      %v749 = vsel %vm414, %v729, 0
      %751 = vmatpush.bf16.msra.mxu0 0
      %752 = vmatpush.bf16.msra.mxu0 0
      %753 = vmatpush.bf16.msra.mxu0 0
      %754 = vmatpush.bf16.msra.mxu0 0
      %755 = vmatpush.bf16.msra.mxu0 0
      %756 = vmatpush.bf16.msra.mxu0 0
      %757 = vmatpush.bf16.msra.mxu0 0
      %758 = vmatpush.bf16.msra.mxu0 %v749
      %759 = vmatmul.bf16.gmra.mxu0 %v737
      %v760 = vpop.f32.mrf.mxu0
      %v761 = vadd.f32 0.0, %v760
      %v762 = vpop.f32.mrf.mxu0
      %v763 = vadd.f32 0.0, %v762
      %764 = vmatmul.bf16.gmra.mxu0 %v740
      %v765 = vpop.f32.mrf.mxu0
      %v766 = vadd.f32 0.0, %v765
      %v767 = vpop.f32.mrf.mxu0
      %v768 = vadd.f32 0.0, %v767
      %769 = vmatmul.bf16.gmra.mxu0 %v743
      %v770 = vpop.f32.mrf.mxu0
      %v771 = vadd.f32 0.0, %v770
      %v772 = vpop.f32.mrf.mxu0
      %v773 = vadd.f32 0.0, %v772
      %774 = vmatmul.bf16.gmra.mxu0 %v746
      %v775 = vpop.f32.mrf.mxu0
      %v776 = vadd.f32 0.0, %v775
      %v777 = vpop.f32.mrf.mxu0
      %v778 = vadd.f32 0.0, %v777
      %779 = vdwg.mxu0
      %v780 = vadd.f32 %v720, %v761
      %v781 = vadd.f32 %v721, %v763
      %v782 = vadd.f32 %v722, %v766
      %v783 = vadd.f32 %v723, %v768
      %v784 = vadd.f32 %v724, %v771
      %v785 = vadd.f32 %v725, %v773
      %v786 = vadd.f32 %v726, %v776
      %v787 = vadd.f32 %v727, %v778
      %s788 = scalar_lea.vmem %s246, 144
      %v789 = vld [vmem:[%s788] sm:$0xf]
      %v790 = vld [vmem:[%s788 + $0x4] sm:$0x1]
      %v791 = vld [vmem:[%s788 + $0x8] sm:$0xf]
      %v792 = vld [vmem:[%s788 + $0xc] sm:$0x1]
      %v793 = vld [vmem:[%s788 + $0x10] sm:$0xf]
      %v794 = vld [vmem:[%s788 + $0x14] sm:$0x1]
      %v795 = vld [vmem:[%s788 + $0x18] sm:$0xf]
      %v796 = vld [vmem:[%s788 + $0x1c] sm:$0x1]
      %v797 = vld [vmem:[%s788 + $0x20] sm:$0xf]
      %v798 = vld [vmem:[%s788 + $0x24] sm:$0x1]
      %v799 = vld [vmem:[%s788 + $0x28] sm:$0xf]
      %v800 = vld [vmem:[%s788 + $0x2c] sm:$0x1]
      %v801 = vld [vmem:[%s788 + $0x30] sm:$0xf]
      %v802 = vld [vmem:[%s788 + $0x34] sm:$0x1]
      %v803 = vld [vmem:[%s788 + $0x38] sm:$0xf]
      %v804 = vld [vmem:[%s788 + $0x3c] sm:$0x1]
      %s805 = scalar_lea.vmem %s1, 6
      %v806 = vld [vmem:[%s805] sm:$0x3]
      %v815 = vunpack.c.l.b16 %v789
      %v816 = vunpack.c.l.b16 %v791
      %v817 = vunpack.c.l.b16 %v793
      %v818 = vunpack.c.l.b16 %v795
      %v819 = vunpack.c.l.b16 %v797
      %v820 = vunpack.c.l.b16 %v799
      %v821 = vunpack.c.l.b16 %v801
      %v822 = vunpack.c.l.b16 %v803
      %v823 = vpack.c.b16 %v816, %v815
      %v824 = vpack.c.b16 %v818, %v817
      %v825 = vpack.c.b16 %v820, %v819
      %v826 = vpack.c.b16 %v822, %v821
      %v828 = vsel %vm401, %v823, 0
      %v831 = vsel %vm401, %v824, 0
      %v834 = vsel %vm401, %v825, 0
      %v837 = vsel %vm401, %v826, 0
      %v840 = vsel %vm414, %v806, 0
      %842 = vmatpush.bf16.msra.mxu0 0
      %843 = vmatpush.bf16.msra.mxu0 0
      %844 = vmatpush.bf16.msra.mxu0 0
      %845 = vmatpush.bf16.msra.mxu0 0
      %846 = vmatpush.bf16.msra.mxu0 0
      %847 = vmatpush.bf16.msra.mxu0 0
      %848 = vmatpush.bf16.msra.mxu0 0
      %849 = vmatpush.bf16.msra.mxu0 %v840
      %850 = vmatmul.bf16.gmra.mxu0 %v828
      %v851 = vpop.f32.mrf.mxu0
      %v852 = vadd.f32 0.0, %v851
      %v853 = vpop.f32.mrf.mxu0
      %v854 = vadd.f32 0.0, %v853
      %855 = vmatmul.bf16.gmra.mxu0 %v831
      %v856 = vpop.f32.mrf.mxu0
      %v857 = vadd.f32 0.0, %v856
      %v858 = vpop.f32.mrf.mxu0
      %v859 = vadd.f32 0.0, %v858
      %860 = vmatmul.bf16.gmra.mxu0 %v834
      %v861 = vpop.f32.mrf.mxu0
      %v862 = vadd.f32 0.0, %v861
      %v863 = vpop.f32.mrf.mxu0
      %v864 = vadd.f32 0.0, %v863
      %865 = vmatmul.bf16.gmra.mxu0 %v837
      %v866 = vpop.f32.mrf.mxu0
      %v867 = vadd.f32 0.0, %v866
      %v868 = vpop.f32.mrf.mxu0
      %v869 = vadd.f32 0.0, %v868
      %870 = vdwg.mxu0
      %v871 = vadd.f32 %v780, %v852
      %v872 = vadd.f32 %v781, %v854
      %v873 = vadd.f32 %v782, %v857
      %v874 = vadd.f32 %v783, %v859
      %v875 = vadd.f32 %v784, %v862
      %v876 = vadd.f32 %v785, %v864
      %v877 = vadd.f32 %v786, %v867
      %v878 = vadd.f32 %v787, %v869
      %v880 = vshrl.u32 %v789, 16
      %v882 = vrot.slane %v880, 4
      %v883 = vshll.u32 %v789, 16
      %v885 = vrot.slane %v883, 5
      %v886 = vor.u32 %v882, %v885
      %v887 = vrot.slane %v886, 4
      %v889 = vshll.u32 %v790, 16
      %v891 = vrot.slane %v889, 5
      %v892 = vsel %vm274, %v887, %v891
      %v894 = vshrl.u32 %v791, 16
      %v896 = vrot.slane %v894, 4
      %v897 = vshll.u32 %v791, 16
      %v899 = vrot.slane %v897, 5
      %v900 = vor.u32 %v896, %v899
      %v901 = vrot.slane %v900, 4
      %v903 = vshll.u32 %v792, 16
      %v905 = vrot.slane %v903, 5
      %v906 = vsel %vm274, %v901, %v905
      %v908 = vshrl.u32 %v793, 16
      %v910 = vrot.slane %v908, 4
      %v911 = vshll.u32 %v793, 16
      %v913 = vrot.slane %v911, 5
      %v914 = vor.u32 %v910, %v913
      %v915 = vrot.slane %v914, 4
      %v917 = vshll.u32 %v794, 16
      %v919 = vrot.slane %v917, 5
      %v920 = vsel %vm274, %v915, %v919
      %v922 = vshrl.u32 %v795, 16
      %v924 = vrot.slane %v922, 4
      %v925 = vshll.u32 %v795, 16
      %v927 = vrot.slane %v925, 5
      %v928 = vor.u32 %v924, %v927
      %v929 = vrot.slane %v928, 4
      %v931 = vshll.u32 %v796, 16
      %v933 = vrot.slane %v931, 5
      %v934 = vsel %vm274, %v929, %v933
      %v936 = vshrl.u32 %v797, 16
      %v938 = vrot.slane %v936, 4
      %v939 = vshll.u32 %v797, 16
      %v941 = vrot.slane %v939, 5
      %v942 = vor.u32 %v938, %v941
      %v943 = vrot.slane %v942, 4
      %v945 = vshll.u32 %v798, 16
      %v947 = vrot.slane %v945, 5
      %v948 = vsel %vm274, %v943, %v947
      %v950 = vshrl.u32 %v799, 16
      %v952 = vrot.slane %v950, 4
      %v953 = vshll.u32 %v799, 16
      %v955 = vrot.slane %v953, 5
      %v956 = vor.u32 %v952, %v955
      %v957 = vrot.slane %v956, 4
      %v959 = vshll.u32 %v800, 16
      %v961 = vrot.slane %v959, 5
      %v962 = vsel %vm274, %v957, %v961
      %v964 = vshrl.u32 %v801, 16
      %v966 = vrot.slane %v964, 4
      %v967 = vshll.u32 %v801, 16
      %v969 = vrot.slane %v967, 5
      %v970 = vor.u32 %v966, %v969
      %v971 = vrot.slane %v970, 4
      %v973 = vshll.u32 %v802, 16
      %v975 = vrot.slane %v973, 5
      %v976 = vsel %vm274, %v971, %v975
      %v978 = vshrl.u32 %v803, 16
      %v980 = vrot.slane %v978, 4
      %v981 = vshll.u32 %v803, 16
      %v983 = vrot.slane %v981, 5
      %v984 = vor.u32 %v980, %v983
      %v985 = vrot.slane %v984, 4
      %v987 = vshll.u32 %v804, 16
      %v989 = vrot.slane %v987, 5
      %v990 = vsel %vm274, %v985, %v989
      %s991 = scalar_lea.vmem %s1, 10
      %v992 = vld [vmem:[%s991] sm:$0x3]
      %v993 = vunpack.c.l.b16 %v892
      %v994 = vunpack.c.l.b16 %v906
      %v995 = vunpack.c.l.b16 %v920
      %v996 = vunpack.c.l.b16 %v934
      %v997 = vunpack.c.l.b16 %v948
      %v998 = vunpack.c.l.b16 %v962
      %v999 = vunpack.c.l.b16 %v976
      %v1000 = vunpack.c.l.b16 %v990
      %v1001 = vpack.c.b16 %v994, %v993
      %v1002 = vpack.c.b16 %v996, %v995
      %v1003 = vpack.c.b16 %v998, %v997
      %v1004 = vpack.c.b16 %v1000, %v999
      %v1006 = vsel %vm401, %v1001, 0
      %v1009 = vsel %vm401, %v1002, 0
      %v1012 = vsel %vm401, %v1003, 0
      %v1015 = vsel %vm401, %v1004, 0
      %v1018 = vsel %vm414, %v992, 0
      %1020 = vmatpush.bf16.msra.mxu0 0
      %1021 = vmatpush.bf16.msra.mxu0 0
      %1022 = vmatpush.bf16.msra.mxu0 0
      %1023 = vmatpush.bf16.msra.mxu0 0
      %1024 = vmatpush.bf16.msra.mxu0 0
      %1025 = vmatpush.bf16.msra.mxu0 0
      %1026 = vmatpush.bf16.msra.mxu0 0
      %1027 = vmatpush.bf16.msra.mxu0 %v1018
      %1028 = vmatmul.bf16.gmra.mxu0 %v1006
      %v1029 = vpop.f32.mrf.mxu0
      %v1030 = vadd.f32 0.0, %v1029
      %v1031 = vpop.f32.mrf.mxu0
      %v1032 = vadd.f32 0.0, %v1031
      %1033 = vmatmul.bf16.gmra.mxu0 %v1009
      %v1034 = vpop.f32.mrf.mxu0
      %v1035 = vadd.f32 0.0, %v1034
      %v1036 = vpop.f32.mrf.mxu0
      %v1037 = vadd.f32 0.0, %v1036
      %1038 = vmatmul.bf16.gmra.mxu0 %v1012
      %v1039 = vpop.f32.mrf.mxu0
      %v1040 = vadd.f32 0.0, %v1039
      %v1041 = vpop.f32.mrf.mxu0
      %v1042 = vadd.f32 0.0, %v1041
      %1043 = vmatmul.bf16.gmra.mxu0 %v1015
      %v1044 = vpop.f32.mrf.mxu0
      %v1045 = vadd.f32 0.0, %v1044
      %v1046 = vpop.f32.mrf.mxu0
      %v1047 = vadd.f32 0.0, %v1046
      %1048 = vdwg.mxu0
      %v1049 = vadd.f32 %v871, %v1030
      %v1050 = vadd.f32 %v872, %v1032
      %v1051 = vadd.f32 %v873, %v1035
      %v1052 = vadd.f32 %v874, %v1037
      %v1053 = vadd.f32 %v875, %v1040
      %v1054 = vadd.f32 %v876, %v1042
      %v1055 = vadd.f32 %v877, %v1045
      %v1056 = vadd.f32 %v878, %v1047
      %s1057 = scalar_lea.vmem %s246, 216
      %v1058 = vld [vmem:[%s1057] sm:$0xf]
      %v1059 = vld [vmem:[%s1057 + $0x8] sm:$0xf]
      %v1060 = vld [vmem:[%s1057 + $0x10] sm:$0xf]
      %v1061 = vld [vmem:[%s1057 + $0x18] sm:$0xf]
      %v1062 = vld [vmem:[%s1057 + $0x20] sm:$0xf]
      %v1063 = vld [vmem:[%s1057 + $0x28] sm:$0xf]
      %v1064 = vld [vmem:[%s1057 + $0x30] sm:$0xf]
      %v1065 = vld [vmem:[%s1057 + $0x38] sm:$0xf]
      %s1066 = scalar_lea.vmem %s1, 8
      %v1067 = vld [vmem:[%s1066] sm:$0x3]
      %v1076 = vunpack.c.l.b16 %v1058
      %v1077 = vunpack.c.l.b16 %v1059
      %v1078 = vunpack.c.l.b16 %v1060
      %v1079 = vunpack.c.l.b16 %v1061
      %v1080 = vunpack.c.l.b16 %v1062
      %v1081 = vunpack.c.l.b16 %v1063
      %v1082 = vunpack.c.l.b16 %v1064
      %v1083 = vunpack.c.l.b16 %v1065
      %v1084 = vpack.c.b16 %v1077, %v1076
      %v1085 = vpack.c.b16 %v1079, %v1078
      %v1086 = vpack.c.b16 %v1081, %v1080
      %v1087 = vpack.c.b16 %v1083, %v1082
      %v1089 = vsel %vm401, %v1084, 0
      %v1092 = vsel %vm401, %v1085, 0
      %v1095 = vsel %vm401, %v1086, 0
      %v1098 = vsel %vm401, %v1087, 0
      %v1101 = vsel %vm414, %v1067, 0
      %1103 = vmatpush.bf16.msra.mxu0 0
      %1104 = vmatpush.bf16.msra.mxu0 0
      %1105 = vmatpush.bf16.msra.mxu0 0
      %1106 = vmatpush.bf16.msra.mxu0 0
      %1107 = vmatpush.bf16.msra.mxu0 0
      %1108 = vmatpush.bf16.msra.mxu0 0
      %1109 = vmatpush.bf16.msra.mxu0 0
      %1110 = vmatpush.bf16.msra.mxu0 %v1101
      %1111 = vmatmul.bf16.gmra.mxu0 %v1089
      %v1112 = vpop.f32.mrf.mxu0
      %v1113 = vadd.f32 0.0, %v1112
      %v1114 = vpop.f32.mrf.mxu0
      %v1115 = vadd.f32 0.0, %v1114
      %1116 = vmatmul.bf16.gmra.mxu0 %v1092
      %v1117 = vpop.f32.mrf.mxu0
      %v1118 = vadd.f32 0.0, %v1117
      %v1119 = vpop.f32.mrf.mxu0
      %v1120 = vadd.f32 0.0, %v1119
      %1121 = vmatmul.bf16.gmra.mxu0 %v1095
      %v1122 = vpop.f32.mrf.mxu0
      %v1123 = vadd.f32 0.0, %v1122
      %v1124 = vpop.f32.mrf.mxu0
      %v1125 = vadd.f32 0.0, %v1124
      %1126 = vmatmul.bf16.gmra.mxu0 %v1098
      %v1127 = vpop.f32.mrf.mxu0
      %v1128 = vadd.f32 0.0, %v1127
      %v1129 = vpop.f32.mrf.mxu0
      %v1130 = vadd.f32 0.0, %v1129
      %1131 = vdwg.mxu0
      %v1132 = vadd.f32 %v1049, %v1113
      %v1133 = vadd.f32 %v1050, %v1115
      %v1134 = vadd.f32 %v1051, %v1118
      %v1135 = vadd.f32 %v1052, %v1120
      %v1136 = vadd.f32 %v1053, %v1123
      %v1137 = vadd.f32 %v1054, %v1125
      %v1138 = vadd.f32 %v1055, %v1128
      %v1139 = vadd.f32 %v1056, %v1130
      %v1140 = vld [vmem:[%s2] sm:$0x3]
      %v1141 = vld [vmem:[%s4] sm:$0x1]
      %v1143 = vperm.slane %v1141, 0
      %v1145 = vadd.f32 %v1132, %v1143
      %v1146 = vadd.f32 %v1133, %v1143
      %v1147 = vadd.f32 %v1134, %v1143
      %v1148 = vadd.f32 %v1135, %v1143
      %v1149 = vadd.f32 %v1136, %v1143
      %v1150 = vadd.f32 %v1137, %v1143
      %v1151 = vadd.f32 %v1138, %v1143
      %v1152 = vadd.f32 %v1139, %v1143
      %v1153 = vmax.f32 %v1145, 0.0
      %v1154 = vmax.f32 %v1146, 0.0
      %v1155 = vmax.f32 %v1147, 0.0
      %v1156 = vmax.f32 %v1148, 0.0
      %v1157 = vmax.f32 %v1149, 0.0
      %v1158 = vmax.f32 %v1150, 0.0
      %v1159 = vmax.f32 %v1151, 0.0
      %v1160 = vmax.f32 %v1152, 0.0
      %vm1161 = vcmask 60416
      %1162 = vst.msk [vmem:[#allocation2] sm:$0xf] %vm1161, 0
      %vm1163 = vcmask 57344
      %1164 = vst.msk [vmem:[#allocation2 + $0x4] sm:$0x1] %vm1163, 0
      %1165 = vst.msk [vmem:[#allocation2 + $0x8] sm:$0xf] %vm1161, 0
      %1166 = vst.msk [vmem:[#allocation2 + $0xc] sm:$0x1] %vm1163, 0
      %1167 = vst.msk [vmem:[#allocation2 + $0x10] sm:$0xf] %vm1161, 0
      %1168 = vst.msk [vmem:[#allocation2 + $0x14] sm:$0x1] %vm1163, 0
      %1169 = vst.msk [vmem:[#allocation2 + $0x18] sm:$0xf] %vm1161, 0
      %1170 = vst.msk [vmem:[#allocation2 + $0x1c] sm:$0x1] %vm1163, 0
      %1171 = vst.msk [vmem:[#allocation2 + $0x20] sm:$0xf] %vm1161, 0
      %1172 = vst.msk [vmem:[#allocation2 + $0x24] sm:$0x1] %vm1163, 0
      %1173 = vst.msk [vmem:[#allocation2 + $0x28] sm:$0xf] %vm1161, 0
      %1174 = vst.msk [vmem:[#allocation2 + $0x2c] sm:$0x1] %vm1163, 0
      %1175 = vst.msk [vmem:[#allocation2 + $0x30] sm:$0xf] %vm1161, 0
      %1176 = vst.msk [vmem:[#allocation2 + $0x34] sm:$0x1] %vm1163, 0
      %1177 = vst.msk [vmem:[#allocation2 + $0x38] sm:$0xf] %vm1161, 0
      %1178 = vst.msk [vmem:[#allocation2 + $0x3c] sm:$0x1] %vm1163, 0
      %1179 = vst.msk [vmem:[#allocation2 + $0x40] sm:$0xf] %vm1161, 0
      %1180 = vst.msk [vmem:[#allocation2 + $0x44] sm:$0x1] %vm1163, 0
      %1181 = vst.msk [vmem:[#allocation2 + $0x48] sm:$0xf] %vm1161, 0
      %1182 = vst.msk [vmem:[#allocation2 + $0x4c] sm:$0x1] %vm1163, 0
      %v1183 = vpack.c.bf16 %v1153, %v1153
      %v1184 = vpack.c.bf16 %v1154, %v1154
      %v1185 = vpack.c.bf16 %v1155, %v1155
      %v1186 = vpack.c.bf16 %v1156, %v1156
      %v1187 = vpack.c.bf16 %v1157, %v1157
      %v1188 = vpack.c.bf16 %v1158, %v1158
      %v1189 = vpack.c.bf16 %v1159, %v1159
      %v1190 = vpack.c.bf16 %v1160, %v1160
      %v1192 = vshrl.u32 %v1183, 16
      %v1194 = vrot.slane %v1192, 7
      %v1195 = vshll.u32 %v1183, 16
      %v1197 = vor.u32 %v1194, %v1195
      %v1198 = vrot.slane %v1194, 4
      %v1200 = vshrl.u32 %v1184, 16
      %v1202 = vrot.slane %v1200, 7
      %v1203 = vshll.u32 %v1184, 16
      %v1205 = vor.u32 %v1202, %v1203
      %v1206 = vrot.slane %v1202, 4
      %v1208 = vshrl.u32 %v1185, 16
      %v1210 = vrot.slane %v1208, 7
      %v1211 = vshll.u32 %v1185, 16
      %v1213 = vor.u32 %v1210, %v1211
      %v1214 = vrot.slane %v1210, 4
      %v1216 = vshrl.u32 %v1186, 16
      %v1218 = vrot.slane %v1216, 7
      %v1219 = vshll.u32 %v1186, 16
      %v1221 = vor.u32 %v1218, %v1219
      %v1222 = vrot.slane %v1218, 4
      %v1224 = vshrl.u32 %v1187, 16
      %v1226 = vrot.slane %v1224, 7
      %v1227 = vshll.u32 %v1187, 16
      %v1229 = vor.u32 %v1226, %v1227
      %v1230 = vrot.slane %v1226, 4
      %v1232 = vshrl.u32 %v1188, 16
      %v1234 = vrot.slane %v1232, 7
      %v1235 = vshll.u32 %v1188, 16
      %v1237 = vor.u32 %v1234, %v1235
      %v1238 = vrot.slane %v1234, 4
      %v1240 = vshrl.u32 %v1189, 16
      %v1242 = vrot.slane %v1240, 7
      %v1243 = vshll.u32 %v1189, 16
      %v1245 = vor.u32 %v1242, %v1243
      %v1246 = vrot.slane %v1242, 4
      %v1248 = vshrl.u32 %v1190, 16
      %v1250 = vrot.slane %v1248, 7
      %v1251 = vshll.u32 %v1190, 16
      %v1253 = vor.u32 %v1250, %v1251
      %v1254 = vrot.slane %v1250, 4
      %s1271 = scalar_lea.vmem [#allocation2], 8
      %vm1272 = vcmask 60416
      %vm1273 = vsmask.f32 7938
      %vm1274 = vmand %vm1272, %vm1273
      %v1275 = vld [vmem:[%s1271] sm:$0xf]
      %v1276 = vsel %vm1274, %v1197, %v1275
      %1277 = vst [vmem:[%s1271] sm:$0xf] %v1276
      %vm1278 = vcmask 57344
      %vm1279 = vsmask.f32 256
      %vm1280 = vmand %vm1278, %vm1279
      %v1281 = vld [vmem:[%s1271 + $0x4] sm:$0x1]
      %v1282 = vsel %vm1280, %v1198, %v1281
      %1283 = vst [vmem:[%s1271 + $0x4] sm:$0x1] %v1282
      %v1284 = vld [vmem:[%s1271 + $0x8] sm:$0xf]
      %v1285 = vsel %vm1274, %v1205, %v1284
      %1286 = vst [vmem:[%s1271 + $0x8] sm:$0xf] %v1285
      %v1287 = vld [vmem:[%s1271 + $0xc] sm:$0x1]
      %v1288 = vsel %vm1280, %v1206, %v1287
      %1289 = vst [vmem:[%s1271 + $0xc] sm:$0x1] %v1288
      %v1290 = vld [vmem:[%s1271 + $0x10] sm:$0xf]
      %v1291 = vsel %vm1274, %v1213, %v1290
      %1292 = vst [vmem:[%s1271 + $0x10] sm:$0xf] %v1291
      %v1293 = vld [vmem:[%s1271 + $0x14] sm:$0x1]
      %v1294 = vsel %vm1280, %v1214, %v1293
      %1295 = vst [vmem:[%s1271 + $0x14] sm:$0x1] %v1294
      %v1296 = vld [vmem:[%s1271 + $0x18] sm:$0xf]
      %v1297 = vsel %vm1274, %v1221, %v1296
      %1298 = vst [vmem:[%s1271 + $0x18] sm:$0xf] %v1297
      %v1299 = vld [vmem:[%s1271 + $0x1c] sm:$0x1]
      %v1300 = vsel %vm1280, %v1222, %v1299
      %1301 = vst [vmem:[%s1271 + $0x1c] sm:$0x1] %v1300
      %v1302 = vld [vmem:[%s1271 + $0x20] sm:$0xf]
      %v1303 = vsel %vm1274, %v1229, %v1302
      %1304 = vst [vmem:[%s1271 + $0x20] sm:$0xf] %v1303
      %v1305 = vld [vmem:[%s1271 + $0x24] sm:$0x1]
      %v1306 = vsel %vm1280, %v1230, %v1305
      %1307 = vst [vmem:[%s1271 + $0x24] sm:$0x1] %v1306
      %v1308 = vld [vmem:[%s1271 + $0x28] sm:$0xf]
      %v1309 = vsel %vm1274, %v1237, %v1308
      %1310 = vst [vmem:[%s1271 + $0x28] sm:$0xf] %v1309
      %v1311 = vld [vmem:[%s1271 + $0x2c] sm:$0x1]
      %v1312 = vsel %vm1280, %v1238, %v1311
      %1313 = vst [vmem:[%s1271 + $0x2c] sm:$0x1] %v1312
      %v1314 = vld [vmem:[%s1271 + $0x30] sm:$0xf]
      %v1315 = vsel %vm1274, %v1245, %v1314
      %1316 = vst [vmem:[%s1271 + $0x30] sm:$0xf] %v1315
      %v1317 = vld [vmem:[%s1271 + $0x34] sm:$0x1]
      %v1318 = vsel %vm1280, %v1246, %v1317
      %1319 = vst [vmem:[%s1271 + $0x34] sm:$0x1] %v1318
      %v1320 = vld [vmem:[%s1271 + $0x38] sm:$0xf]
      %v1321 = vsel %vm1274, %v1253, %v1320
      %1322 = vst [vmem:[%s1271 + $0x38] sm:$0xf] %v1321
      %v1323 = vld [vmem:[%s1271 + $0x3c] sm:$0x1]
      %v1324 = vsel %vm1280, %v1254, %v1323
      %1325 = vst [vmem:[%s1271 + $0x3c] sm:$0x1] %v1324
      %v1326 = vld [vmem:[%s5] sm:$0x1]
      %v1328 = vperm.slane %v1326, 0
      %v1331 = vsel %vm414, %v1140, 0
      %1333 = vmatpush.bf16.msra.mxu0 0
      %1334 = vmatpush.bf16.msra.mxu0 0
      %1335 = vmatpush.bf16.msra.mxu0 0
      %1336 = vmatpush.bf16.msra.mxu0 0
      %1337 = vmatpush.bf16.msra.mxu0 0
      %1338 = vmatpush.bf16.msra.mxu0 0
      %1339 = vmatpush.bf16.msra.mxu0 0
      %1340 = vmatpush.bf16.msra.mxu0 %v1331
      %1341 = vmatmul.bf16.gmra.mxu0 %v1089
      %v1342 = vpop.f32.mrf.mxu0
      %v1343 = vadd.f32 %v1328, %v1342
      %v1344 = vpop.f32.mrf.mxu0
      %v1345 = vadd.f32 %v1328, %v1344
      %1346 = vmatmul.bf16.gmra.mxu0 %v1092
      %v1347 = vpop.f32.mrf.mxu0
      %v1348 = vadd.f32 %v1328, %v1347
      %v1349 = vpop.f32.mrf.mxu0
      %v1350 = vadd.f32 %v1328, %v1349
      %1351 = vmatmul.bf16.gmra.mxu0 %v1095
      %v1352 = vpop.f32.mrf.mxu0
      %v1353 = vadd.f32 %v1328, %v1352
      %v1354 = vpop.f32.mrf.mxu0
      %v1355 = vadd.f32 %v1328, %v1354
      %1356 = vmatmul.bf16.gmra.mxu0 %v1098
      %v1357 = vpop.f32.mrf.mxu0
      %v1358 = vadd.f32 %v1328, %v1357
      %v1359 = vpop.f32.mrf.mxu0
      %v1360 = vadd.f32 %v1328, %v1359
      %1361 = vdwg.mxu0
      %v1362 = vld [vmem:[#allocation2] sm:$0xf]
      %v1363 = vld [vmem:[#allocation2 + $0x8] sm:$0xf]
      %v1364 = vld [vmem:[#allocation2 + $0x10] sm:$0xf]
      %v1365 = vld [vmem:[#allocation2 + $0x18] sm:$0xf]
      %v1366 = vld [vmem:[#allocation2 + $0x20] sm:$0xf]
      %v1367 = vld [vmem:[#allocation2 + $0x28] sm:$0xf]
      %v1368 = vld [vmem:[#allocation2 + $0x30] sm:$0xf]
      %v1369 = vld [vmem:[#allocation2 + $0x38] sm:$0xf]
      %v1370 = vld [vmem:[%s3] sm:$0xf]
      %v1379 = vunpack.c.l.b16 %v1362
      %v1380 = vunpack.c.l.b16 %v1363
      %v1381 = vunpack.c.l.b16 %v1364
      %v1382 = vunpack.c.l.b16 %v1365
      %v1383 = vunpack.c.l.b16 %v1366
      %v1384 = vunpack.c.l.b16 %v1367
      %v1385 = vunpack.c.l.b16 %v1368
      %v1386 = vunpack.c.l.b16 %v1369
      %v1387 = vpack.c.b16 %v1380, %v1379
      %v1388 = vpack.c.b16 %v1382, %v1381
      %v1389 = vpack.c.b16 %v1384, %v1383
      %v1390 = vpack.c.b16 %v1386, %v1385
      %vm1391 = vcmask 64512
      %v1393 = vsel %vm1391, %v1387, 0
      %v1396 = vsel %vm1391, %v1388, 0
      %v1399 = vsel %vm1391, %v1389, 0
      %v1402 = vsel %vm1391, %v1390, 0
      %vm1404 = vcmask 1043456
      %v1406 = vsel %vm1404, %v1370, 0
      %1408 = vmatpush.bf16.msra.mxu0 0
      %1409 = vmatpush.bf16.msra.mxu0 0
      %1410 = vmatpush.bf16.msra.mxu0 0
      %1411 = vmatpush.bf16.msra.mxu0 0
      %1412 = vmatpush.bf16.msra.mxu0 0
      %1413 = vmatpush.bf16.msra.mxu0 0
      %1414 = vmatpush.bf16.msra.mxu0 0
      %1415 = vmatpush.bf16.msra.mxu0 %v1406
      %1416 = vmatmul.bf16.gmra.mxu0 %v1393
      %v1417 = vpop.f32.mrf.mxu0
      %v1418 = vadd.f32 0.0, %v1417
      %v1419 = vpop.f32.mrf.mxu0
      %v1420 = vadd.f32 0.0, %v1419
      %1421 = vmatmul.bf16.gmra.mxu0 %v1396
      %v1422 = vpop.f32.mrf.mxu0
      %v1423 = vadd.f32 0.0, %v1422
      %v1424 = vpop.f32.mrf.mxu0
      %v1425 = vadd.f32 0.0, %v1424
      %1426 = vmatmul.bf16.gmra.mxu0 %v1399
      %v1427 = vpop.f32.mrf.mxu0
      %v1428 = vadd.f32 0.0, %v1427
      %v1429 = vpop.f32.mrf.mxu0
      %v1430 = vadd.f32 0.0, %v1429
      %1431 = vmatmul.bf16.gmra.mxu0 %v1402
      %v1432 = vpop.f32.mrf.mxu0
      %v1433 = vadd.f32 0.0, %v1432
      %v1434 = vpop.f32.mrf.mxu0
      %v1435 = vadd.f32 0.0, %v1434
      %1436 = vdwg.mxu0
      %v1437 = vadd.f32 %v1343, %v1418
      %v1438 = vadd.f32 %v1345, %v1420
      %v1439 = vadd.f32 %v1348, %v1423
      %v1440 = vadd.f32 %v1350, %v1425
      %v1441 = vadd.f32 %v1353, %v1428
      %v1442 = vadd.f32 %v1355, %v1430
      %v1443 = vadd.f32 %v1358, %v1433
      %v1444 = vadd.f32 %v1360, %v1435
      %v1445 = vld [vmem:[#allocation2] sm:$0xf]
      %v1446 = vld [vmem:[#allocation2 + $0x4] sm:$0x1]
      %v1447 = vld [vmem:[#allocation2 + $0x8] sm:$0xf]
      %v1448 = vld [vmem:[#allocation2 + $0xc] sm:$0x1]
      %v1449 = vld [vmem:[#allocation2 + $0x10] sm:$0xf]
      %v1450 = vld [vmem:[#allocation2 + $0x14] sm:$0x1]
      %v1451 = vld [vmem:[#allocation2 + $0x18] sm:$0xf]
      %v1452 = vld [vmem:[#allocation2 + $0x1c] sm:$0x1]
      %v1453 = vld [vmem:[#allocation2 + $0x20] sm:$0xf]
      %v1454 = vld [vmem:[#allocation2 + $0x24] sm:$0x1]
      %v1455 = vld [vmem:[#allocation2 + $0x28] sm:$0xf]
      %v1456 = vld [vmem:[#allocation2 + $0x2c] sm:$0x1]
      %v1457 = vld [vmem:[#allocation2 + $0x30] sm:$0xf]
      %v1458 = vld [vmem:[#allocation2 + $0x34] sm:$0x1]
      %v1459 = vld [vmem:[#allocation2 + $0x38] sm:$0xf]
      %v1460 = vld [vmem:[#allocation2 + $0x3c] sm:$0x1]
      %v1462 = vshrl.u32 %v1445, 16
      %v1464 = vrot.slane %v1462, 4
      %v1465 = vshll.u32 %v1445, 16
      %v1467 = vrot.slane %v1465, 5
      %v1468 = vor.u32 %v1464, %v1467
      %v1469 = vrot.slane %v1468, 4
      %v1471 = vshll.u32 %v1446, 16
      %v1473 = vrot.slane %v1471, 5
      %v1474 = vsel %vm274, %v1469, %v1473
      %v1476 = vshrl.u32 %v1447, 16
      %v1478 = vrot.slane %v1476, 4
      %v1479 = vshll.u32 %v1447, 16
      %v1481 = vrot.slane %v1479, 5
      %v1482 = vor.u32 %v1478, %v1481
      %v1483 = vrot.slane %v1482, 4
      %v1485 = vshll.u32 %v1448, 16
      %v1487 = vrot.slane %v1485, 5
      %v1488 = vsel %vm274, %v1483, %v1487
      %v1490 = vshrl.u32 %v1449, 16
      %v1492 = vrot.slane %v1490, 4
      %v1493 = vshll.u32 %v1449, 16
      %v1495 = vrot.slane %v1493, 5
      %v1496 = vor.u32 %v1492, %v1495
      %v1497 = vrot.slane %v1496, 4
      %v1499 = vshll.u32 %v1450, 16
      %v1501 = vrot.slane %v1499, 5
      %v1502 = vsel %vm274, %v1497, %v1501
      %v1504 = vshrl.u32 %v1451, 16
      %v1506 = vrot.slane %v1504, 4
      %v1507 = vshll.u32 %v1451, 16
      %v1509 = vrot.slane %v1507, 5
      %v1510 = vor.u32 %v1506, %v1509
      %v1511 = vrot.slane %v1510, 4
      %v1513 = vshll.u32 %v1452, 16
      %v1515 = vrot.slane %v1513, 5
      %v1516 = vsel %vm274, %v1511, %v1515
      %v1518 = vshrl.u32 %v1453, 16
      %v1520 = vrot.slane %v1518, 4
      %v1521 = vshll.u32 %v1453, 16
      %v1523 = vrot.slane %v1521, 5
      %v1524 = vor.u32 %v1520, %v1523
      %v1525 = vrot.slane %v1524, 4
      %v1527 = vshll.u32 %v1454, 16
      %v1529 = vrot.slane %v1527, 5
      %v1530 = vsel %vm274, %v1525, %v1529
      %v1532 = vshrl.u32 %v1455, 16
      %v1534 = vrot.slane %v1532, 4
      %v1535 = vshll.u32 %v1455, 16
      %v1537 = vrot.slane %v1535, 5
      %v1538 = vor.u32 %v1534, %v1537
      %v1539 = vrot.slane %v1538, 4
      %v1541 = vshll.u32 %v1456, 16
      %v1543 = vrot.slane %v1541, 5
      %v1544 = vsel %vm274, %v1539, %v1543
      %v1546 = vshrl.u32 %v1457, 16
      %v1548 = vrot.slane %v1546, 4
      %v1549 = vshll.u32 %v1457, 16
      %v1551 = vrot.slane %v1549, 5
      %v1552 = vor.u32 %v1548, %v1551
      %v1553 = vrot.slane %v1552, 4
      %v1555 = vshll.u32 %v1458, 16
      %v1557 = vrot.slane %v1555, 5
      %v1558 = vsel %vm274, %v1553, %v1557
      %v1560 = vshrl.u32 %v1459, 16
      %v1562 = vrot.slane %v1560, 4
      %v1563 = vshll.u32 %v1459, 16
      %v1565 = vrot.slane %v1563, 5
      %v1566 = vor.u32 %v1562, %v1565
      %v1567 = vrot.slane %v1566, 4
      %v1569 = vshll.u32 %v1460, 16
      %v1571 = vrot.slane %v1569, 5
      %v1572 = vsel %vm274, %v1567, %v1571
      %s1573 = scalar_lea.vmem %s3, 4
      %v1574 = vld [vmem:[%s1573] sm:$0xf]
      %v1575 = vunpack.c.l.b16 %v1474
      %v1576 = vunpack.c.l.b16 %v1488
      %v1577 = vunpack.c.l.b16 %v1502
      %v1578 = vunpack.c.l.b16 %v1516
      %v1579 = vunpack.c.l.b16 %v1530
      %v1580 = vunpack.c.l.b16 %v1544
      %v1581 = vunpack.c.l.b16 %v1558
      %v1582 = vunpack.c.l.b16 %v1572
      %v1583 = vpack.c.b16 %v1576, %v1575
      %v1584 = vpack.c.b16 %v1578, %v1577
      %v1585 = vpack.c.b16 %v1580, %v1579
      %v1586 = vpack.c.b16 %v1582, %v1581
      %v1588 = vsel %vm1391, %v1583, 0
      %v1591 = vsel %vm1391, %v1584, 0
      %v1594 = vsel %vm1391, %v1585, 0
      %v1597 = vsel %vm1391, %v1586, 0
      %v1600 = vsel %vm1404, %v1574, 0
      %1602 = vmatpush.bf16.msra.mxu0 0
      %1603 = vmatpush.bf16.msra.mxu0 0
      %1604 = vmatpush.bf16.msra.mxu0 0
      %1605 = vmatpush.bf16.msra.mxu0 0
      %1606 = vmatpush.bf16.msra.mxu0 0
      %1607 = vmatpush.bf16.msra.mxu0 0
      %1608 = vmatpush.bf16.msra.mxu0 0
      %1609 = vmatpush.bf16.msra.mxu0 %v1600
      %1610 = vmatmul.bf16.gmra.mxu0 %v1588
      %v1611 = vpop.f32.mrf.mxu0
      %v1612 = vadd.f32 0.0, %v1611
      %v1613 = vpop.f32.mrf.mxu0
      %v1614 = vadd.f32 0.0, %v1613
      %1615 = vmatmul.bf16.gmra.mxu0 %v1591
      %v1616 = vpop.f32.mrf.mxu0
      %v1617 = vadd.f32 0.0, %v1616
      %v1618 = vpop.f32.mrf.mxu0
      %v1619 = vadd.f32 0.0, %v1618
      %1620 = vmatmul.bf16.gmra.mxu0 %v1594
      %v1621 = vpop.f32.mrf.mxu0
      %v1622 = vadd.f32 0.0, %v1621
      %v1623 = vpop.f32.mrf.mxu0
      %v1624 = vadd.f32 0.0, %v1623
      %1625 = vmatmul.bf16.gmra.mxu0 %v1597
      %v1626 = vpop.f32.mrf.mxu0
      %v1627 = vadd.f32 0.0, %v1626
      %v1628 = vpop.f32.mrf.mxu0
      %v1629 = vadd.f32 0.0, %v1628
      %1630 = vdwg.mxu0
      %v1631 = vadd.f32 %v1437, %v1612
      %v1632 = vadd.f32 %v1438, %v1614
      %v1633 = vadd.f32 %v1439, %v1617
      %v1634 = vadd.f32 %v1440, %v1619
      %v1635 = vadd.f32 %v1441, %v1622
      %v1636 = vadd.f32 %v1442, %v1624
      %v1637 = vadd.f32 %v1443, %v1627
      %v1638 = vadd.f32 %v1444, %v1629
      %v1639 = vld [vmem:[#allocation2] sm:$0xe]
      %v1640 = vld [vmem:[#allocation2 + $0x8] sm:$0xe]
      %v1641 = vld [vmem:[#allocation2 + $0x10] sm:$0xe]
      %v1642 = vld [vmem:[#allocation2 + $0x18] sm:$0xe]
      %v1643 = vld [vmem:[#allocation2 + $0x20] sm:$0xe]
      %v1644 = vld [vmem:[#allocation2 + $0x28] sm:$0xe]
      %v1645 = vld [vmem:[#allocation2 + $0x30] sm:$0xe]
      %v1646 = vld [vmem:[#allocation2 + $0x38] sm:$0xe]
      %vm1663 = vcmask 1042432
      %vm1664 = vcmask 1046532
      %vm1665 = vmor %vm1663, %vm1664
      %v1666 = vrot.slane %v1639, 5
      %v1667 = vrot.slane %v1666, 4
      %v1668 = vrot.slane %v1446, 5
      %v1669 = vsel %vm1665, %v1667, %v1668
      %v1670 = vrot.slane %v1640, 5
      %v1671 = vrot.slane %v1670, 4
      %v1672 = vrot.slane %v1448, 5
      %v1673 = vsel %vm1665, %v1671, %v1672
      %v1674 = vrot.slane %v1641, 5
      %v1675 = vrot.slane %v1674, 4
      %v1676 = vrot.slane %v1450, 5
      %v1677 = vsel %vm1665, %v1675, %v1676
      %v1678 = vrot.slane %v1642, 5
      %v1679 = vrot.slane %v1678, 4
      %v1680 = vrot.slane %v1452, 5
      %v1681 = vsel %vm1665, %v1679, %v1680
      %v1682 = vrot.slane %v1643, 5
      %v1683 = vrot.slane %v1682, 4
      %v1684 = vrot.slane %v1454, 5
      %v1685 = vsel %vm1665, %v1683, %v1684
      %v1686 = vrot.slane %v1644, 5
      %v1687 = vrot.slane %v1686, 4
      %v1688 = vrot.slane %v1456, 5
      %v1689 = vsel %vm1665, %v1687, %v1688
      %v1690 = vrot.slane %v1645, 5
      %v1691 = vrot.slane %v1690, 4
      %v1692 = vrot.slane %v1458, 5
      %v1693 = vsel %vm1665, %v1691, %v1692
      %v1694 = vrot.slane %v1646, 5
      %v1695 = vrot.slane %v1694, 4
      %v1696 = vrot.slane %v1460, 5
      %v1697 = vsel %vm1665, %v1695, %v1696
      %s1698 = scalar_lea.vmem %s3, 8
      %v1699 = vld [vmem:[%s1698] sm:$0xf]
      %v1700 = vunpack.c.l.b16 %v1669
      %v1701 = vunpack.c.l.b16 %v1673
      %v1702 = vunpack.c.l.b16 %v1677
      %v1703 = vunpack.c.l.b16 %v1681
      %v1704 = vunpack.c.l.b16 %v1685
      %v1705 = vunpack.c.l.b16 %v1689
      %v1706 = vunpack.c.l.b16 %v1693
      %v1707 = vunpack.c.l.b16 %v1697
      %v1708 = vpack.c.b16 %v1701, %v1700
      %v1709 = vpack.c.b16 %v1703, %v1702
      %v1710 = vpack.c.b16 %v1705, %v1704
      %v1711 = vpack.c.b16 %v1707, %v1706
      %v1713 = vsel %vm1391, %v1708, 0
      %v1716 = vsel %vm1391, %v1709, 0
      %v1719 = vsel %vm1391, %v1710, 0
      %v1722 = vsel %vm1391, %v1711, 0
      %v1725 = vsel %vm1404, %v1699, 0
      %1727 = vmatpush.bf16.msra.mxu0 0
      %1728 = vmatpush.bf16.msra.mxu0 0
      %1729 = vmatpush.bf16.msra.mxu0 0
      %1730 = vmatpush.bf16.msra.mxu0 0
      %1731 = vmatpush.bf16.msra.mxu0 0
      %1732 = vmatpush.bf16.msra.mxu0 0
      %1733 = vmatpush.bf16.msra.mxu0 0
      %1734 = vmatpush.bf16.msra.mxu0 %v1725
      %1735 = vmatmul.bf16.gmra.mxu0 %v1713
      %v1736 = vpop.f32.mrf.mxu0
      %v1737 = vadd.f32 0.0, %v1736
      %v1738 = vpop.f32.mrf.mxu0
      %v1739 = vadd.f32 0.0, %v1738
      %1740 = vmatmul.bf16.gmra.mxu0 %v1716
      %v1741 = vpop.f32.mrf.mxu0
      %v1742 = vadd.f32 0.0, %v1741
      %v1743 = vpop.f32.mrf.mxu0
      %v1744 = vadd.f32 0.0, %v1743
      %1745 = vmatmul.bf16.gmra.mxu0 %v1719
      %v1746 = vpop.f32.mrf.mxu0
      %v1747 = vadd.f32 0.0, %v1746
      %v1748 = vpop.f32.mrf.mxu0
      %v1749 = vadd.f32 0.0, %v1748
      %1750 = vmatmul.bf16.gmra.mxu0 %v1722
      %v1751 = vpop.f32.mrf.mxu0
      %v1752 = vadd.f32 0.0, %v1751
      %v1753 = vpop.f32.mrf.mxu0
      %v1754 = vadd.f32 0.0, %v1753
      %1755 = vdwg.mxu0
      %v1756 = vadd.f32 %v1631, %v1737
      %v1757 = vadd.f32 %v1632, %v1739
      %v1758 = vadd.f32 %v1633, %v1742
      %v1759 = vadd.f32 %v1634, %v1744
      %v1760 = vadd.f32 %v1635, %v1747
      %v1761 = vadd.f32 %v1636, %v1749
      %v1762 = vadd.f32 %v1637, %v1752
      %v1763 = vadd.f32 %v1638, %v1754
      %v1764 = vld [vmem:[%s1271] sm:$0xf]
      %v1765 = vld [vmem:[%s1271 + $0x8] sm:$0xf]
      %v1766 = vld [vmem:[%s1271 + $0x10] sm:$0xf]
      %v1767 = vld [vmem:[%s1271 + $0x18] sm:$0xf]
      %v1768 = vld [vmem:[%s1271 + $0x20] sm:$0xf]
      %v1769 = vld [vmem:[%s1271 + $0x28] sm:$0xf]
      %v1770 = vld [vmem:[%s1271 + $0x30] sm:$0xf]
      %v1771 = vld [vmem:[%s1271 + $0x38] sm:$0xf]
      %s1772 = scalar_lea.vmem %s3, 12
      %v1773 = vld [vmem:[%s1772] sm:$0xf]
      %v1782 = vunpack.c.l.b16 %v1764
      %v1783 = vunpack.c.l.b16 %v1765
      %v1784 = vunpack.c.l.b16 %v1766
      %v1785 = vunpack.c.l.b16 %v1767
      %v1786 = vunpack.c.l.b16 %v1768
      %v1787 = vunpack.c.l.b16 %v1769
      %v1788 = vunpack.c.l.b16 %v1770
      %v1789 = vunpack.c.l.b16 %v1771
      %v1790 = vpack.c.b16 %v1783, %v1782
      %v1791 = vpack.c.b16 %v1785, %v1784
      %v1792 = vpack.c.b16 %v1787, %v1786
      %v1793 = vpack.c.b16 %v1789, %v1788
      %v1795 = vsel %vm1391, %v1790, 0
      %v1798 = vsel %vm1391, %v1791, 0
      %v1801 = vsel %vm1391, %v1792, 0
      %v1804 = vsel %vm1391, %v1793, 0
      %v1807 = vsel %vm1404, %v1773, 0
      %1809 = vmatpush.bf16.msra.mxu0 0
      %1810 = vmatpush.bf16.msra.mxu0 0
      %1811 = vmatpush.bf16.msra.mxu0 0
      %1812 = vmatpush.bf16.msra.mxu0 0
      %1813 = vmatpush.bf16.msra.mxu0 0
      %1814 = vmatpush.bf16.msra.mxu0 0
      %1815 = vmatpush.bf16.msra.mxu0 0
      %1816 = vmatpush.bf16.msra.mxu0 %v1807
      %1817 = vmatmul.bf16.gmra.mxu0 %v1795
      %v1818 = vpop.f32.mrf.mxu0
      %v1819 = vadd.f32 0.0, %v1818
      %v1820 = vpop.f32.mrf.mxu0
      %v1821 = vadd.f32 0.0, %v1820
      %1822 = vmatmul.bf16.gmra.mxu0 %v1798
      %v1823 = vpop.f32.mrf.mxu0
      %v1824 = vadd.f32 0.0, %v1823
      %v1825 = vpop.f32.mrf.mxu0
      %v1826 = vadd.f32 0.0, %v1825
      %1827 = vmatmul.bf16.gmra.mxu0 %v1801
      %v1828 = vpop.f32.mrf.mxu0
      %v1829 = vadd.f32 0.0, %v1828
      %v1830 = vpop.f32.mrf.mxu0
      %v1831 = vadd.f32 0.0, %v1830
      %1832 = vmatmul.bf16.gmra.mxu0 %v1804
      %v1833 = vpop.f32.mrf.mxu0
      %v1834 = vadd.f32 0.0, %v1833
      %v1835 = vpop.f32.mrf.mxu0
      %v1836 = vadd.f32 0.0, %v1835
      %1837 = vdwg.mxu0
      %v1838 = vadd.f32 %v1756, %v1819
      %v1839 = vadd.f32 %v1757, %v1821
      %v1840 = vadd.f32 %v1758, %v1824
      %v1841 = vadd.f32 %v1759, %v1826
      %v1842 = vadd.f32 %v1760, %v1829
      %v1843 = vadd.f32 %v1761, %v1831
      %v1844 = vadd.f32 %v1762, %v1834
      %v1845 = vadd.f32 %v1763, %v1836
      %v1846 = vld [vmem:[%s1271] sm:$0xf]
      %v1847 = vld [vmem:[%s1271 + $0x4] sm:$0x1]
      %v1848 = vld [vmem:[%s1271 + $0x8] sm:$0xf]
      %v1849 = vld [vmem:[%s1271 + $0xc] sm:$0x1]
      %v1850 = vld [vmem:[%s1271 + $0x10] sm:$0xf]
      %v1851 = vld [vmem:[%s1271 + $0x14] sm:$0x1]
      %v1852 = vld [vmem:[%s1271 + $0x18] sm:$0xf]
      %v1853 = vld [vmem:[%s1271 + $0x1c] sm:$0x1]
      %v1854 = vld [vmem:[%s1271 + $0x20] sm:$0xf]
      %v1855 = vld [vmem:[%s1271 + $0x24] sm:$0x1]
      %v1856 = vld [vmem:[%s1271 + $0x28] sm:$0xf]
      %v1857 = vld [vmem:[%s1271 + $0x2c] sm:$0x1]
      %v1858 = vld [vmem:[%s1271 + $0x30] sm:$0xf]
      %v1859 = vld [vmem:[%s1271 + $0x34] sm:$0x1]
      %v1860 = vld [vmem:[%s1271 + $0x38] sm:$0xf]
      %v1861 = vld [vmem:[%s1271 + $0x3c] sm:$0x1]
      %v1863 = vshrl.u32 %v1846, 16
      %v1865 = vrot.slane %v1863, 4
      %v1866 = vshll.u32 %v1846, 16
      %v1868 = vrot.slane %v1866, 5
      %v1869 = vor.u32 %v1865, %v1868
      %v1870 = vrot.slane %v1869, 4
      %v1872 = vshll.u32 %v1847, 16
      %v1874 = vrot.slane %v1872, 5
      %v1875 = vsel %vm274, %v1870, %v1874
      %v1877 = vshrl.u32 %v1848, 16
      %v1879 = vrot.slane %v1877, 4
      %v1880 = vshll.u32 %v1848, 16
      %v1882 = vrot.slane %v1880, 5
      %v1883 = vor.u32 %v1879, %v1882
      %v1884 = vrot.slane %v1883, 4
      %v1886 = vshll.u32 %v1849, 16
      %v1888 = vrot.slane %v1886, 5
      %v1889 = vsel %vm274, %v1884, %v1888
      %v1891 = vshrl.u32 %v1850, 16
      %v1893 = vrot.slane %v1891, 4
      %v1894 = vshll.u32 %v1850, 16
      %v1896 = vrot.slane %v1894, 5
      %v1897 = vor.u32 %v1893, %v1896
      %v1898 = vrot.slane %v1897, 4
      %v1900 = vshll.u32 %v1851, 16
      %v1902 = vrot.slane %v1900, 5
      %v1903 = vsel %vm274, %v1898, %v1902
      %v1905 = vshrl.u32 %v1852, 16
      %v1907 = vrot.slane %v1905, 4
      %v1908 = vshll.u32 %v1852, 16
      %v1910 = vrot.slane %v1908, 5
      %v1911 = vor.u32 %v1907, %v1910
      %v1912 = vrot.slane %v1911, 4
      %v1914 = vshll.u32 %v1853, 16
      %v1916 = vrot.slane %v1914, 5
      %v1917 = vsel %vm274, %v1912, %v1916
      %v1919 = vshrl.u32 %v1854, 16
      %v1921 = vrot.slane %v1919, 4
      %v1922 = vshll.u32 %v1854, 16
      %v1924 = vrot.slane %v1922, 5
      %v1925 = vor.u32 %v1921, %v1924
      %v1926 = vrot.slane %v1925, 4
      %v1928 = vshll.u32 %v1855, 16
      %v1930 = vrot.slane %v1928, 5
      %v1931 = vsel %vm274, %v1926, %v1930
      %v1933 = vshrl.u32 %v1856, 16
      %v1935 = vrot.slane %v1933, 4
      %v1936 = vshll.u32 %v1856, 16
      %v1938 = vrot.slane %v1936, 5
      %v1939 = vor.u32 %v1935, %v1938
      %v1940 = vrot.slane %v1939, 4
      %v1942 = vshll.u32 %v1857, 16
      %v1944 = vrot.slane %v1942, 5
      %v1945 = vsel %vm274, %v1940, %v1944
      %v1947 = vshrl.u32 %v1858, 16
      %v1949 = vrot.slane %v1947, 4
      %v1950 = vshll.u32 %v1858, 16
      %v1952 = vrot.slane %v1950, 5
      %v1953 = vor.u32 %v1949, %v1952
      %v1954 = vrot.slane %v1953, 4
      %v1956 = vshll.u32 %v1859, 16
      %v1958 = vrot.slane %v1956, 5
      %v1959 = vsel %vm274, %v1954, %v1958
      %v1961 = vshrl.u32 %v1860, 16
      %v1963 = vrot.slane %v1961, 4
      %v1964 = vshll.u32 %v1860, 16
      %v1966 = vrot.slane %v1964, 5
      %v1967 = vor.u32 %v1963, %v1966
      %v1968 = vrot.slane %v1967, 4
      %v1970 = vshll.u32 %v1861, 16
      %v1972 = vrot.slane %v1970, 5
      %v1973 = vsel %vm274, %v1968, %v1972
      %s1974 = scalar_lea.vmem %s3, 16
      %v1975 = vld [vmem:[%s1974] sm:$0xf]
      %v1976 = vunpack.c.l.b16 %v1875
      %v1977 = vunpack.c.l.b16 %v1889
      %v1978 = vunpack.c.l.b16 %v1903
      %v1979 = vunpack.c.l.b16 %v1917
      %v1980 = vunpack.c.l.b16 %v1931
      %v1981 = vunpack.c.l.b16 %v1945
      %v1982 = vunpack.c.l.b16 %v1959
      %v1983 = vunpack.c.l.b16 %v1973
      %v1984 = vpack.c.b16 %v1977, %v1976
      %v1985 = vpack.c.b16 %v1979, %v1978
      %v1986 = vpack.c.b16 %v1981, %v1980
      %v1987 = vpack.c.b16 %v1983, %v1982
      %v1989 = vsel %vm1391, %v1984, 0
      %v1992 = vsel %vm1391, %v1985, 0
      %v1995 = vsel %vm1391, %v1986, 0
      %v1998 = vsel %vm1391, %v1987, 0
      %v2001 = vsel %vm1404, %v1975, 0
      %2003 = vmatpush.bf16.msra.mxu0 0
      %2004 = vmatpush.bf16.msra.mxu0 0
      %2005 = vmatpush.bf16.msra.mxu0 0
      %2006 = vmatpush.bf16.msra.mxu0 0
      %2007 = vmatpush.bf16.msra.mxu0 0
      %2008 = vmatpush.bf16.msra.mxu0 0
      %2009 = vmatpush.bf16.msra.mxu0 0
      %2010 = vmatpush.bf16.msra.mxu0 %v2001
      %2011 = vmatmul.bf16.gmra.mxu0 %v1989
      %v2012 = vpop.f32.mrf.mxu0
      %v2013 = vadd.f32 0.0, %v2012
      %v2014 = vpop.f32.mrf.mxu0
      %v2015 = vadd.f32 0.0, %v2014
      %2016 = vmatmul.bf16.gmra.mxu0 %v1992
      %v2017 = vpop.f32.mrf.mxu0
      %v2018 = vadd.f32 0.0, %v2017
      %v2019 = vpop.f32.mrf.mxu0
      %v2020 = vadd.f32 0.0, %v2019
      %2021 = vmatmul.bf16.gmra.mxu0 %v1995
      %v2022 = vpop.f32.mrf.mxu0
      %v2023 = vadd.f32 0.0, %v2022
      %v2024 = vpop.f32.mrf.mxu0
      %v2025 = vadd.f32 0.0, %v2024
      %2026 = vmatmul.bf16.gmra.mxu0 %v1998
      %v2027 = vpop.f32.mrf.mxu0
      %v2028 = vadd.f32 0.0, %v2027
      %v2029 = vpop.f32.mrf.mxu0
      %v2030 = vadd.f32 0.0, %v2029
      %2031 = vdwg.mxu0
      %v2032 = vadd.f32 %v1838, %v2013
      %v2033 = vadd.f32 %v1839, %v2015
      %v2034 = vadd.f32 %v1840, %v2018
      %v2035 = vadd.f32 %v1841, %v2020
      %v2036 = vadd.f32 %v1842, %v2023
      %v2037 = vadd.f32 %v1843, %v2025
      %v2038 = vadd.f32 %v1844, %v2028
      %v2039 = vadd.f32 %v1845, %v2030
      %v2040 = vld [vmem:[%s1271] sm:$0xe]
      %v2041 = vld [vmem:[%s1271 + $0x8] sm:$0xe]
      %v2042 = vld [vmem:[%s1271 + $0x10] sm:$0xe]
      %v2043 = vld [vmem:[%s1271 + $0x18] sm:$0xe]
      %v2044 = vld [vmem:[%s1271 + $0x20] sm:$0xe]
      %v2045 = vld [vmem:[%s1271 + $0x28] sm:$0xe]
      %v2046 = vld [vmem:[%s1271 + $0x30] sm:$0xe]
      %v2047 = vld [vmem:[%s1271 + $0x38] sm:$0xe]
      %v2064 = vrot.slane %v2040, 5
      %v2065 = vrot.slane %v2064, 4
      %v2066 = vrot.slane %v1847, 5
      %v2067 = vsel %vm1665, %v2065, %v2066
      %v2068 = vrot.slane %v2041, 5
      %v2069 = vrot.slane %v2068, 4
      %v2070 = vrot.slane %v1849, 5
      %v2071 = vsel %vm1665, %v2069, %v2070
      %v2072 = vrot.slane %v2042, 5
      %v2073 = vrot.slane %v2072, 4
      %v2074 = vrot.slane %v1851, 5
      %v2075 = vsel %vm1665, %v2073, %v2074
      %v2076 = vrot.slane %v2043, 5
      %v2077 = vrot.slane %v2076, 4
      %v2078 = vrot.slane %v1853, 5
      %v2079 = vsel %vm1665, %v2077, %v2078
      %v2080 = vrot.slane %v2044, 5
      %v2081 = vrot.slane %v2080, 4
      %v2082 = vrot.slane %v1855, 5
      %v2083 = vsel %vm1665, %v2081, %v2082
      %v2084 = vrot.slane %v2045, 5
      %v2085 = vrot.slane %v2084, 4
      %v2086 = vrot.slane %v1857, 5
      %v2087 = vsel %vm1665, %v2085, %v2086
      %v2088 = vrot.slane %v2046, 5
      %v2089 = vrot.slane %v2088, 4
      %v2090 = vrot.slane %v1859, 5
      %v2091 = vsel %vm1665, %v2089, %v2090
      %v2092 = vrot.slane %v2047, 5
      %v2093 = vrot.slane %v2092, 4
      %v2094 = vrot.slane %v1861, 5
      %v2095 = vsel %vm1665, %v2093, %v2094
      %s2096 = scalar_lea.vmem %s3, 20
      %v2097 = vld [vmem:[%s2096] sm:$0xf]
      %v2098 = vunpack.c.l.b16 %v2067
      %v2099 = vunpack.c.l.b16 %v2071
      %v2100 = vunpack.c.l.b16 %v2075
      %v2101 = vunpack.c.l.b16 %v2079
      %v2102 = vunpack.c.l.b16 %v2083
      %v2103 = vunpack.c.l.b16 %v2087
      %v2104 = vunpack.c.l.b16 %v2091
      %v2105 = vunpack.c.l.b16 %v2095
      %v2106 = vpack.c.b16 %v2099, %v2098
      %v2107 = vpack.c.b16 %v2101, %v2100
      %v2108 = vpack.c.b16 %v2103, %v2102
      %v2109 = vpack.c.b16 %v2105, %v2104
      %v2111 = vsel %vm1391, %v2106, 0
      %v2114 = vsel %vm1391, %v2107, 0
      %v2117 = vsel %vm1391, %v2108, 0
      %v2120 = vsel %vm1391, %v2109, 0
      %v2123 = vsel %vm1404, %v2097, 0
      %2125 = vmatpush.bf16.msra.mxu0 0
      %2126 = vmatpush.bf16.msra.mxu0 0
      %2127 = vmatpush.bf16.msra.mxu0 0
      %2128 = vmatpush.bf16.msra.mxu0 0
      %2129 = vmatpush.bf16.msra.mxu0 0
      %2130 = vmatpush.bf16.msra.mxu0 0
      %2131 = vmatpush.bf16.msra.mxu0 0
      %2132 = vmatpush.bf16.msra.mxu0 %v2123
      %2133 = vmatmul.bf16.gmra.mxu0 %v2111
      %v2134 = vpop.f32.mrf.mxu0
      %v2135 = vadd.f32 0.0, %v2134
      %v2136 = vpop.f32.mrf.mxu0
      %v2137 = vadd.f32 0.0, %v2136
      %2138 = vmatmul.bf16.gmra.mxu0 %v2114
      %v2139 = vpop.f32.mrf.mxu0
      %v2140 = vadd.f32 0.0, %v2139
      %v2141 = vpop.f32.mrf.mxu0
      %v2142 = vadd.f32 0.0, %v2141
      %2143 = vmatmul.bf16.gmra.mxu0 %v2117
      %v2144 = vpop.f32.mrf.mxu0
      %v2145 = vadd.f32 0.0, %v2144
      %v2146 = vpop.f32.mrf.mxu0
      %v2147 = vadd.f32 0.0, %v2146
      %2148 = vmatmul.bf16.gmra.mxu0 %v2120
      %v2149 = vpop.f32.mrf.mxu0
      %v2150 = vadd.f32 0.0, %v2149
      %v2151 = vpop.f32.mrf.mxu0
      %v2152 = vadd.f32 0.0, %v2151
      %2153 = vdwg.mxu0
      %v2154 = vadd.f32 %v2032, %v2135
      %v2155 = vadd.f32 %v2033, %v2137
      %v2156 = vadd.f32 %v2034, %v2140
      %v2157 = vadd.f32 %v2035, %v2142
      %v2158 = vadd.f32 %v2036, %v2145
      %v2159 = vadd.f32 %v2037, %v2147
      %v2160 = vadd.f32 %v2038, %v2150
      %v2161 = vadd.f32 %v2039, %v2152
      %s2162 = scalar_lea.vmem [#allocation2], 16
      %v2163 = vld [vmem:[%s2162] sm:$0xf]
      %v2164 = vld [vmem:[%s2162 + $0x8] sm:$0xf]
      %v2165 = vld [vmem:[%s2162 + $0x10] sm:$0xf]
      %v2166 = vld [vmem:[%s2162 + $0x18] sm:$0xf]
      %v2167 = vld [vmem:[%s2162 + $0x20] sm:$0xf]
      %v2168 = vld [vmem:[%s2162 + $0x28] sm:$0xf]
      %v2169 = vld [vmem:[%s2162 + $0x30] sm:$0xf]
      %v2170 = vld [vmem:[%s2162 + $0x38] sm:$0xf]
      %s2171 = scalar_lea.vmem %s3, 24
      %v2172 = vld [vmem:[%s2171] sm:$0xf]
      %v2181 = vunpack.c.l.b16 %v2163
      %v2182 = vunpack.c.l.b16 %v2164
      %v2183 = vunpack.c.l.b16 %v2165
      %v2184 = vunpack.c.l.b16 %v2166
      %v2185 = vunpack.c.l.b16 %v2167
      %v2186 = vunpack.c.l.b16 %v2168
      %v2187 = vunpack.c.l.b16 %v2169
      %v2188 = vunpack.c.l.b16 %v2170
      %v2189 = vpack.c.b16 %v2182, %v2181
      %v2190 = vpack.c.b16 %v2184, %v2183
      %v2191 = vpack.c.b16 %v2186, %v2185
      %v2192 = vpack.c.b16 %v2188, %v2187
      %v2194 = vsel %vm1391, %v2189, 0
      %v2197 = vsel %vm1391, %v2190, 0
      %v2200 = vsel %vm1391, %v2191, 0
      %v2203 = vsel %vm1391, %v2192, 0
      %v2206 = vsel %vm1404, %v2172, 0
      %2208 = vmatpush.bf16.msra.mxu0 0
      %2209 = vmatpush.bf16.msra.mxu0 0
      %2210 = vmatpush.bf16.msra.mxu0 0
      %2211 = vmatpush.bf16.msra.mxu0 0
      %2212 = vmatpush.bf16.msra.mxu0 0
      %2213 = vmatpush.bf16.msra.mxu0 0
      %2214 = vmatpush.bf16.msra.mxu0 0
      %2215 = vmatpush.bf16.msra.mxu0 %v2206
      %2216 = vmatmul.bf16.gmra.mxu0 %v2194
      %v2217 = vpop.f32.mrf.mxu0
      %v2218 = vadd.f32 0.0, %v2217
      %v2219 = vpop.f32.mrf.mxu0
      %v2220 = vadd.f32 0.0, %v2219
      %2221 = vmatmul.bf16.gmra.mxu0 %v2197
      %v2222 = vpop.f32.mrf.mxu0
      %v2223 = vadd.f32 0.0, %v2222
      %v2224 = vpop.f32.mrf.mxu0
      %v2225 = vadd.f32 0.0, %v2224
      %2226 = vmatmul.bf16.gmra.mxu0 %v2200
      %v2227 = vpop.f32.mrf.mxu0
      %v2228 = vadd.f32 0.0, %v2227
      %v2229 = vpop.f32.mrf.mxu0
      %v2230 = vadd.f32 0.0, %v2229
      %2231 = vmatmul.bf16.gmra.mxu0 %v2203
      %v2232 = vpop.f32.mrf.mxu0
      %v2233 = vadd.f32 0.0, %v2232
      %v2234 = vpop.f32.mrf.mxu0
      %v2235 = vadd.f32 0.0, %v2234
      %2236 = vdwg.mxu0
      %v2237 = vadd.f32 %v2154, %v2218
      %v2238 = vadd.f32 %v2155, %v2220
      %v2239 = vadd.f32 %v2156, %v2223
      %v2240 = vadd.f32 %v2157, %v2225
      %v2241 = vadd.f32 %v2158, %v2228
      %v2242 = vadd.f32 %v2159, %v2230
      %v2243 = vadd.f32 %v2160, %v2233
      %v2244 = vadd.f32 %v2161, %v2235
      %v2245 = vld [vmem:[%s2162] sm:$0xf]
      %v2246 = vld [vmem:[%s2162 + $0x4] sm:$0x1]
      %v2247 = vld [vmem:[%s2162 + $0x8] sm:$0xf]
      %v2248 = vld [vmem:[%s2162 + $0xc] sm:$0x1]
      %v2249 = vld [vmem:[%s2162 + $0x10] sm:$0xf]
      %v2250 = vld [vmem:[%s2162 + $0x14] sm:$0x1]
      %v2251 = vld [vmem:[%s2162 + $0x18] sm:$0xf]
      %v2252 = vld [vmem:[%s2162 + $0x1c] sm:$0x1]
      %v2253 = vld [vmem:[%s2162 + $0x20] sm:$0xf]
      %v2254 = vld [vmem:[%s2162 + $0x24] sm:$0x1]
      %v2255 = vld [vmem:[%s2162 + $0x28] sm:$0xf]
      %v2256 = vld [vmem:[%s2162 + $0x2c] sm:$0x1]
      %v2257 = vld [vmem:[%s2162 + $0x30] sm:$0xf]
      %v2258 = vld [vmem:[%s2162 + $0x34] sm:$0x1]
      %v2259 = vld [vmem:[%s2162 + $0x38] sm:$0xf]
      %v2260 = vld [vmem:[%s2162 + $0x3c] sm:$0x1]
      %v2262 = vshrl.u32 %v2245, 16
      %v2264 = vrot.slane %v2262, 4
      %v2265 = vshll.u32 %v2245, 16
      %v2267 = vrot.slane %v2265, 5
      %v2268 = vor.u32 %v2264, %v2267
      %v2269 = vrot.slane %v2268, 4
      %v2271 = vshll.u32 %v2246, 16
      %v2273 = vrot.slane %v2271, 5
      %v2274 = vsel %vm274, %v2269, %v2273
      %v2276 = vshrl.u32 %v2247, 16
      %v2278 = vrot.slane %v2276, 4
      %v2279 = vshll.u32 %v2247, 16
      %v2281 = vrot.slane %v2279, 5
      %v2282 = vor.u32 %v2278, %v2281
      %v2283 = vrot.slane %v2282, 4
      %v2285 = vshll.u32 %v2248, 16
      %v2287 = vrot.slane %v2285, 5
      %v2288 = vsel %vm274, %v2283, %v2287
      %v2290 = vshrl.u32 %v2249, 16
      %v2292 = vrot.slane %v2290, 4
      %v2293 = vshll.u32 %v2249, 16
      %v2295 = vrot.slane %v2293, 5
      %v2296 = vor.u32 %v2292, %v2295
      %v2297 = vrot.slane %v2296, 4
      %v2299 = vshll.u32 %v2250, 16
      %v2301 = vrot.slane %v2299, 5
      %v2302 = vsel %vm274, %v2297, %v2301
      %v2304 = vshrl.u32 %v2251, 16
      %v2306 = vrot.slane %v2304, 4
      %v2307 = vshll.u32 %v2251, 16
      %v2309 = vrot.slane %v2307, 5
      %v2310 = vor.u32 %v2306, %v2309
      %v2311 = vrot.slane %v2310, 4
      %v2313 = vshll.u32 %v2252, 16
      %v2315 = vrot.slane %v2313, 5
      %v2316 = vsel %vm274, %v2311, %v2315
      %v2318 = vshrl.u32 %v2253, 16
      %v2320 = vrot.slane %v2318, 4
      %v2321 = vshll.u32 %v2253, 16
      %v2323 = vrot.slane %v2321, 5
      %v2324 = vor.u32 %v2320, %v2323
      %v2325 = vrot.slane %v2324, 4
      %v2327 = vshll.u32 %v2254, 16
      %v2329 = vrot.slane %v2327, 5
      %v2330 = vsel %vm274, %v2325, %v2329
      %v2332 = vshrl.u32 %v2255, 16
      %v2334 = vrot.slane %v2332, 4
      %v2335 = vshll.u32 %v2255, 16
      %v2337 = vrot.slane %v2335, 5
      %v2338 = vor.u32 %v2334, %v2337
      %v2339 = vrot.slane %v2338, 4
      %v2341 = vshll.u32 %v2256, 16
      %v2343 = vrot.slane %v2341, 5
      %v2344 = vsel %vm274, %v2339, %v2343
      %v2346 = vshrl.u32 %v2257, 16
      %v2348 = vrot.slane %v2346, 4
      %v2349 = vshll.u32 %v2257, 16
      %v2351 = vrot.slane %v2349, 5
      %v2352 = vor.u32 %v2348, %v2351
      %v2353 = vrot.slane %v2352, 4
      %v2355 = vshll.u32 %v2258, 16
      %v2357 = vrot.slane %v2355, 5
      %v2358 = vsel %vm274, %v2353, %v2357
      %v2360 = vshrl.u32 %v2259, 16
      %v2362 = vrot.slane %v2360, 4
      %v2363 = vshll.u32 %v2259, 16
      %v2365 = vrot.slane %v2363, 5
      %v2366 = vor.u32 %v2362, %v2365
      %v2367 = vrot.slane %v2366, 4
      %v2369 = vshll.u32 %v2260, 16
      %v2371 = vrot.slane %v2369, 5
      %v2372 = vsel %vm274, %v2367, %v2371
      %s2373 = scalar_lea.vmem %s3, 28
      %v2374 = vld [vmem:[%s2373] sm:$0xf]
      %v2375 = vunpack.c.l.b16 %v2274
      %v2376 = vunpack.c.l.b16 %v2288
      %v2377 = vunpack.c.l.b16 %v2302
      %v2378 = vunpack.c.l.b16 %v2316
      %v2379 = vunpack.c.l.b16 %v2330
      %v2380 = vunpack.c.l.b16 %v2344
      %v2381 = vunpack.c.l.b16 %v2358
      %v2382 = vunpack.c.l.b16 %v2372
      %v2383 = vpack.c.b16 %v2376, %v2375
      %v2384 = vpack.c.b16 %v2378, %v2377
      %v2385 = vpack.c.b16 %v2380, %v2379
      %v2386 = vpack.c.b16 %v2382, %v2381
      %v2388 = vsel %vm1391, %v2383, 0
      %v2391 = vsel %vm1391, %v2384, 0
      %v2394 = vsel %vm1391, %v2385, 0
      %v2397 = vsel %vm1391, %v2386, 0
      %v2400 = vsel %vm1404, %v2374, 0
      %2402 = vmatpush.bf16.msra.mxu0 0
      %2403 = vmatpush.bf16.msra.mxu0 0
      %2404 = vmatpush.bf16.msra.mxu0 0
      %2405 = vmatpush.bf16.msra.mxu0 0
      %2406 = vmatpush.bf16.msra.mxu0 0
      %2407 = vmatpush.bf16.msra.mxu0 0
      %2408 = vmatpush.bf16.msra.mxu0 0
      %2409 = vmatpush.bf16.msra.mxu0 %v2400
      %2410 = vmatmul.bf16.gmra.mxu0 %v2388
      %v2411 = vpop.f32.mrf.mxu0
      %v2412 = vadd.f32 0.0, %v2411
      %v2413 = vpop.f32.mrf.mxu0
      %v2414 = vadd.f32 0.0, %v2413
      %2415 = vmatmul.bf16.gmra.mxu0 %v2391
      %v2416 = vpop.f32.mrf.mxu0
      %v2417 = vadd.f32 0.0, %v2416
      %v2418 = vpop.f32.mrf.mxu0
      %v2419 = vadd.f32 0.0, %v2418
      %2420 = vmatmul.bf16.gmra.mxu0 %v2394
      %v2421 = vpop.f32.mrf.mxu0
      %v2422 = vadd.f32 0.0, %v2421
      %v2423 = vpop.f32.mrf.mxu0
      %v2424 = vadd.f32 0.0, %v2423
      %2425 = vmatmul.bf16.gmra.mxu0 %v2397
      %v2426 = vpop.f32.mrf.mxu0
      %v2427 = vadd.f32 0.0, %v2426
      %v2428 = vpop.f32.mrf.mxu0
      %v2429 = vadd.f32 0.0, %v2428
      %2430 = vdwg.mxu0
      %v2431 = vadd.f32 %v2237, %v2412
      %v2432 = vadd.f32 %v2238, %v2414
      %v2433 = vadd.f32 %v2239, %v2417
      %v2434 = vadd.f32 %v2240, %v2419
      %v2435 = vadd.f32 %v2241, %v2422
      %v2436 = vadd.f32 %v2242, %v2424
      %v2437 = vadd.f32 %v2243, %v2427
      %v2438 = vadd.f32 %v2244, %v2429
      %v2439 = vld [vmem:[%s2162] sm:$0xe]
      %v2440 = vld [vmem:[%s2162 + $0x8] sm:$0xe]
      %v2441 = vld [vmem:[%s2162 + $0x10] sm:$0xe]
      %v2442 = vld [vmem:[%s2162 + $0x18] sm:$0xe]
      %v2443 = vld [vmem:[%s2162 + $0x20] sm:$0xe]
      %v2444 = vld [vmem:[%s2162 + $0x28] sm:$0xe]
      %v2445 = vld [vmem:[%s2162 + $0x30] sm:$0xe]
      %v2446 = vld [vmem:[%s2162 + $0x38] sm:$0xe]
      %v2463 = vrot.slane %v2439, 5
      %v2464 = vrot.slane %v2463, 4
      %v2465 = vrot.slane %v2246, 5
      %v2466 = vsel %vm1665, %v2464, %v2465
      %v2467 = vrot.slane %v2440, 5
      %v2468 = vrot.slane %v2467, 4
      %v2469 = vrot.slane %v2248, 5
      %v2470 = vsel %vm1665, %v2468, %v2469
      %v2471 = vrot.slane %v2441, 5
      %v2472 = vrot.slane %v2471, 4
      %v2473 = vrot.slane %v2250, 5
      %v2474 = vsel %vm1665, %v2472, %v2473
      %v2475 = vrot.slane %v2442, 5
      %v2476 = vrot.slane %v2475, 4
      %v2477 = vrot.slane %v2252, 5
      %v2478 = vsel %vm1665, %v2476, %v2477
      %v2479 = vrot.slane %v2443, 5
      %v2480 = vrot.slane %v2479, 4
      %v2481 = vrot.slane %v2254, 5
      %v2482 = vsel %vm1665, %v2480, %v2481
      %v2483 = vrot.slane %v2444, 5
      %v2484 = vrot.slane %v2483, 4
      %v2485 = vrot.slane %v2256, 5
      %v2486 = vsel %vm1665, %v2484, %v2485
      %v2487 = vrot.slane %v2445, 5
      %v2488 = vrot.slane %v2487, 4
      %v2489 = vrot.slane %v2258, 5
      %v2490 = vsel %vm1665, %v2488, %v2489
      %v2491 = vrot.slane %v2446, 5
      %v2492 = vrot.slane %v2491, 4
      %v2493 = vrot.slane %v2260, 5
      %v2494 = vsel %vm1665, %v2492, %v2493
      %s2495 = scalar_lea.vmem %s3, 32
      %v2496 = vld [vmem:[%s2495] sm:$0xf]
      %v2497 = vunpack.c.l.b16 %v2466
      %v2498 = vunpack.c.l.b16 %v2470
      %v2499 = vunpack.c.l.b16 %v2474
      %v2500 = vunpack.c.l.b16 %v2478
      %v2501 = vunpack.c.l.b16 %v2482
      %v2502 = vunpack.c.l.b16 %v2486
      %v2503 = vunpack.c.l.b16 %v2490
      %v2504 = vunpack.c.l.b16 %v2494
      %v2505 = vpack.c.b16 %v2498, %v2497
      %v2506 = vpack.c.b16 %v2500, %v2499
      %v2507 = vpack.c.b16 %v2502, %v2501
      %v2508 = vpack.c.b16 %v2504, %v2503
      %v2510 = vsel %vm1391, %v2505, 0
      %v2513 = vsel %vm1391, %v2506, 0
      %v2516 = vsel %vm1391, %v2507, 0
      %v2519 = vsel %vm1391, %v2508, 0
      %v2522 = vsel %vm1404, %v2496, 0
      %2524 = vmatpush.bf16.msra.mxu0 0
      %2525 = vmatpush.bf16.msra.mxu0 0
      %2526 = vmatpush.bf16.msra.mxu0 0
      %2527 = vmatpush.bf16.msra.mxu0 0
      %2528 = vmatpush.bf16.msra.mxu0 0
      %2529 = vmatpush.bf16.msra.mxu0 0
      %2530 = vmatpush.bf16.msra.mxu0 0
      %2531 = vmatpush.bf16.msra.mxu0 %v2522
      %2532 = vmatmul.bf16.gmra.mxu0 %v2510
      %v2533 = vpop.f32.mrf.mxu0
      %v2534 = vadd.f32 0.0, %v2533
      %v2535 = vpop.f32.mrf.mxu0
      %v2536 = vadd.f32 0.0, %v2535
      %2537 = vmatmul.bf16.gmra.mxu0 %v2513
      %v2538 = vpop.f32.mrf.mxu0
      %v2539 = vadd.f32 0.0, %v2538
      %v2540 = vpop.f32.mrf.mxu0
      %v2541 = vadd.f32 0.0, %v2540
      %2542 = vmatmul.bf16.gmra.mxu0 %v2516
      %v2543 = vpop.f32.mrf.mxu0
      %v2544 = vadd.f32 0.0, %v2543
      %v2545 = vpop.f32.mrf.mxu0
      %v2546 = vadd.f32 0.0, %v2545
      %2547 = vmatmul.bf16.gmra.mxu0 %v2519
      %v2548 = vpop.f32.mrf.mxu0
      %v2549 = vadd.f32 0.0, %v2548
      %v2550 = vpop.f32.mrf.mxu0
      %v2551 = vadd.f32 0.0, %v2550
      %2552 = vdwg.mxu0
      %v2553 = vadd.f32 %v2431, %v2534
      %v2554 = vadd.f32 %v2432, %v2536
      %v2555 = vadd.f32 %v2433, %v2539
      %v2556 = vadd.f32 %v2434, %v2541
      %v2557 = vadd.f32 %v2435, %v2544
      %v2558 = vadd.f32 %v2436, %v2546
      %v2559 = vadd.f32 %v2437, %v2549
      %v2560 = vadd.f32 %v2438, %v2551
      %2561 = vst.msk [vmem:[%s251] sm:$0xff] %vm1391, %v2553
      %2562 = vst.msk [vmem:[%s251 + $0x8] sm:$0xff] %vm1391, %v2554
      %2563 = vst.msk [vmem:[%s251 + $0x10] sm:$0xff] %vm1391, %v2555
      %2564 = vst.msk [vmem:[%s251 + $0x18] sm:$0xff] %vm1391, %v2556
      %2565 = vst.msk [vmem:[%s251 + $0x20] sm:$0xff] %vm1391, %v2557
      %2566 = vst.msk [vmem:[%s251 + $0x28] sm:$0xff] %vm1391, %v2558
      %2567 = vst.msk [vmem:[%s251 + $0x30] sm:$0xff] %vm1391, %v2559
      %2568 = vst.msk [vmem:[%s251 + $0x38] sm:$0xff] %vm1391, %v2560
      %p2569 = scmp.lt.s32.totalorder %s17, 1
      %s2570 = scalar_select %p2569, %s17, 1
      %s2571 = smul.addr %s2570, 8
      %s2572 = smul.addr %s2571, 8
      %s2573 = scalar_lea.vmem %s6, %s2572
      // Predicated region
      $region45: #{residual_block_forward.1} parent=43 // pred_check
        %p2574 = pneg %p166
      $region46: #{residual_block_forward.1} parent=43 // pred_check_branch
        %2576 = sbr.rel (%p2574) target = $region48
      $region47: #{residual_block_forward.1} parent=43 // pred_region
        _
      $region48: #{residual_block_forward.1} parent=43 // pred_fallthru
        _
    $region44: #{residual_block_forward.1} parent=5 // pred_fallthru
      _
    %p2577 = scmp.le.s32.totalorder 2, %s12
    // Predicated region
    $region49: #{residual_block_forward.1} parent=5 // pred_check
      %p2578 = pneg %p2577
    $region50: #{residual_block_forward.1} parent=5 // pred_check_branch
      %2580 = sbr.rel (%p2578) target = $region52
    $region51: #{residual_block_forward.1} parent=5 // pred_region
      %s2581 = ssub.s32 %s12, 2
      // Predicated region
      $region53: #{residual_block_forward.1} parent=51 // pred_check
        %p2582 = pneg %p172
      $region54: #{residual_block_forward.1} parent=51 // pred_check_branch
        %2584 = sbr.rel (%p2582) target = $region56
      $region55: #{residual_block_forward.1} parent=51 // pred_region
        %p2585 = scmp.lt.s32.totalorder %s18, 1
        %s2586 = scalar_select %p2585, %s18, 1
        %s2587 = smul.addr %s2586, 8
        %s2588 = smul.addr %s2587, 8
        %s2589 = scalar_lea.vmem %s6, %s2588
      $region56: #{residual_block_forward.1} parent=51 // pred_fallthru
        _
    $region52: #{residual_block_forward.1} parent=5 // pred_fallthru
      _
  $region6: #{residual_block_forward.1} parent=0 // loop_footer
    %s16 = sadd.s32 1, %s12
  $region7: #{residual_block_forward.1} parent=0 // loop_footer_branch
    %11 = sbr.rel target = $region3
  $region8: #{residual_block_forward.1} parent=0 // loop_exit
    _

</llo_original>
